<compile_context>
chip_gen: v7x
topology: tpu7x:2x2x1
jax: 0.10.0
libtpu: 0.0.40
codegen_flags: <defaults>
</compile_context>

<pallas_src>
import functools

import jax
import jax.numpy as jnp
from jax.experimental import pallas as pl
from jax.experimental.pallas import tpu as pltpu


def _lstm_kernel(x_ref, wih0_ref, wihr_ref, whh_ref, b_ref, wfc_ref, bfc_ref,
                 out_ref, gx_scr, seq_scr, *, n_layers, hidden, seq_len, batch):
    T, B, H = seq_len, batch, hidden

    h_last = None
    for l in range(n_layers):
        # ---- time-parallel input projection (one MXU matmul, off the serial
        # ---- critical path), bias folded in once per layer ----
        if l == 0:
            inp_all = x_ref[...]                       # (T*B, E)
            w_x = wih0_ref[...]                        # (E, 4H)
        else:
            inp_all = seq_scr[...]                     # (T*B, H)
            w_x = wihr_ref[l - 1]                      # (H, 4H)
        gx_scr[...] = (jnp.dot(inp_all, w_x,
                               preferred_element_type=jnp.float32)
                       + b_ref[l:l + 1, :])            # (T*B, 4H)

        w_h = whh_ref[l]                               # (H, 4H)

        # ---- serial recurrence: h/c live in vregs; one (B,H)x(H,4H) matmul
        # ---- per step on the critical path ----
        h = jnp.zeros((B, H), jnp.float32)
        c = jnp.zeros((B, H), jnp.float32)
        for t in range(T):                             # static T -> unrolled
            gates = gx_scr[t * B:(t + 1) * B, :] + jnp.dot(
                h, w_h, preferred_element_type=jnp.float32)    # (B, 4H)

            sg = jax.nn.sigmoid(gates)                 # one full-width EUP pass
            th = jnp.tanh(gates)                       # one full-width EUP pass
            i_g = sg[:, 0 * H:1 * H]
            f_g = sg[:, 1 * H:2 * H]
            g_g = th[:, 2 * H:3 * H]
            o_g = sg[:, 3 * H:4 * H]

            c = f_g * c + i_g * g_g
            h = o_g * jnp.tanh(c)

            if l < n_layers - 1:                       # feed the next layer
                seq_scr[t * B:(t + 1) * B, :] = h
        h_last = h

    # fc head on the last-timestep hidden state of the top layer
    out_ref[...] = (jnp.dot(h_last, wfc_ref[...],
                            preferred_element_type=jnp.float32)
                    + bfc_ref[...])


def lstm_forward(x, params, *, n_layers, hidden):
    """x: (B, T, enc_in) float32 -> (B, 1, c_out) float32."""
    B, T, E = x.shape
    wih0, wihr, whh, b, wfc, bfc = params
    C = wfc.shape[-1]

    # time-major and flattened to (T*B, E) so the kernel needs no reshapes
    x_flat = jnp.transpose(x, (1, 0, 2)).reshape(T * B, E)

    kernel = functools.partial(_lstm_kernel, n_layers=n_layers, hidden=hidden,
                               seq_len=T, batch=B)

    out = pl.pallas_call(
        kernel,
        out_shape=jax.ShapeDtypeStruct((B, C), jnp.float32),
        # No grid: every (tiny) operand is fully VMEM-resident for one step.
        scratch_shapes=[
            pltpu.VMEM((T * B, 4 * hidden), jnp.float32),   # per-layer gx
            pltpu.VMEM((T * B, hidden), jnp.float32),       # layer output seq
        ],
    )(x_flat, wih0, wihr, whh, b, wfc, bfc)

    return out[:, None, :]  # (B, 1, C)


def lstm_reference(x, params, *, n_layers, hidden):
    """Pure-JAX reference with PyTorch LSTM semantics."""
    wih0, wihr, whh, b, wfc, bfc = params
    B, T, E = x.shape
    H = hidden

    def cell(inp, h, c, w_x, w_h, bias):
        g = inp @ w_x + h @ w_h + bias
        i = jax.nn.sigmoid(g[:, 0 * H:1 * H])
        f = jax.nn.sigmoid(g[:, 1 * H:2 * H])
        gg = jnp.tanh(g[:, 2 * H:3 * H])
        o = jax.nn.sigmoid(g[:, 3 * H:4 * H])
        c_new = f * c + i * gg
        h_new = o * jnp.tanh(c_new)
        return h_new, c_new

    h = jnp.zeros((n_layers, B, H), jnp.float32)
    c = jnp.zeros((n_layers, B, H), jnp.float32)
    for t in range(T):
        inp = x[:, t, :]
        for l in range(n_layers):
            w_x = wih0 if l == 0 else wihr[l - 1]
            h_new, c_new = cell(inp, h[l], c[l], w_x, whh[l], b[l])
            h = h.at[l].set(h_new)
            c = c.at[l].set(c_new)
            inp = h_new
    out = h[n_layers - 1] @ wfc + bfc
    return out[:, None, :]


def init_params(key, *, enc_in, d_model, n_layers, c_out):
    """Deterministic synthetic parameters (PyTorch-style uniform init)."""
    H, G = d_model, 4 * d_model
    bound = 1.0 / (H ** 0.5)
    ks = jax.random.split(key, 6)
    wih0 = jax.random.uniform(ks[0], (enc_in, G), jnp.float32, -bound, bound)
    wihr = jax.random.uniform(ks[1], (max(n_layers - 1, 1), H, G),
                              jnp.float32, -bound, bound)
    whh = jax.random.uniform(ks[2], (n_layers, H, G), jnp.float32, -bound, bound)
    b = jax.random.uniform(ks[3], (n_layers, G), jnp.float32, -bound, bound)  # b_ih + b_hh merged
    wfc = jax.random.uniform(ks[4], (H, c_out), jnp.float32, -bound, bound)
    bfc = jax.random.uniform(ks[5], (1, c_out), jnp.float32, -bound, bound)
    return (wih0, wihr, whh, b, wfc, bfc)


if __name__ == "__main__":
    # config: enc_in=4, d_model=32, e_layers=2, c_out=4, pred_len=1, label_len=0
    B, T, ENC_IN = 2, 8, 4
    D_MODEL, E_LAYERS, C_OUT = 32, 2, 4

    key = jax.random.PRNGKey(0)
    kx, kp = jax.random.split(key)
    x = jax.random.normal(kx, (B, T, ENC_IN), jnp.float32)
    params = init_params(kp, enc_in=ENC_IN, d_model=D_MODEL,
                         n_layers=E_LAYERS, c_out=C_OUT)

    out = lstm_forward(x, params, n_layers=E_LAYERS, hidden=D_MODEL)
    out = jax.block_until_ready(out)

    ref = lstm_reference(x, params, n_layers=E_LAYERS, hidden=D_MODEL)
    assert out.shape == (B, 1, C_OUT), out.shape
    assert jnp.allclose(out, ref, rtol=1e-5, atol=1e-5), \
        f"max err {jnp.max(jnp.abs(out - ref))}"

    print("KERNEL_OK")
</pallas_src>

<mosaic_0001>
module attributes {stable_mosaic.version = 11 : i64} {
  func.func @_lstm_kernel(%arg0: memref<16x4xf32, #tpu.memory_space<vmem>>, %arg1: memref<4x128xf32, #tpu.memory_space<vmem>>, %arg2: memref<1x32x128xf32, #tpu.memory_space<vmem>>, %arg3: memref<2x32x128xf32, #tpu.memory_space<vmem>>, %arg4: memref<2x128xf32, #tpu.memory_space<vmem>>, %arg5: memref<32x4xf32, #tpu.memory_space<vmem>>, %arg6: memref<1x4xf32, #tpu.memory_space<vmem>>, %arg7: memref<2x4xf32, #tpu.memory_space<vmem>>, %arg8: memref<16x128xf32, #tpu.memory_space<vmem>>, %arg9: memref<16x32xf32, #tpu.memory_space<vmem>>) attributes {dimension_semantics = [], scalar_prefetch = 0 : i64, scratch_operands = 2 : i64, tpu.core_type = #tpu.core_type<tc>} {
    %c0 = arith.constant 0 : index
    %c0_0 = arith.constant 0 : index
    %0 = vector.load %arg0[%c0, %c0_0] : memref<16x4xf32, #tpu.memory_space<vmem>>, vector<16x4xf32>
    %c0_1 = arith.constant 0 : index
    %c0_2 = arith.constant 0 : index
    %1 = vector.load %arg1[%c0_1, %c0_2] : memref<4x128xf32, #tpu.memory_space<vmem>>, vector<4x128xf32>
    %cst = arith.constant dense<0.000000e+00> : vector<16x128xf32>
    %2 = tpu.matmul %0, %1, %cst {dimension_numbers = #tpu.dot_dimension_numbers<[1], [0], [0], [1], [0, 0, 1, 1], [], []>} : vector<16x4xf32>, vector<4x128xf32>, vector<16x128xf32> -> vector<16x128xf32>
    %c0_3 = arith.constant 0 : index
    %c0_4 = arith.constant 0 : index
    %3 = vector.load %arg4[%c0_3, %c0_4] : memref<2x128xf32, #tpu.memory_space<vmem>>, vector<1x128xf32>
    %4 = vector.broadcast %3 : vector<1x128xf32> to vector<16x128xf32>
    %5 = arith.addf %2, %4 : vector<16x128xf32>
    %c0_5 = arith.constant 0 : index
    %c0_6 = arith.constant 0 : index
    %6 = vector.load %arg8[%c0_5, %c0_6] : memref<16x128xf32, #tpu.memory_space<vmem>>, vector<16x128xf32>
    tpu.vector_store %arg8[%c0_5, %c0_6], %5 {strides = array<i32>} : memref<16x128xf32, #tpu.memory_space<vmem>>, vector<16x128xf32>,
    %c0_7 = arith.constant 0 : index
    %c0_8 = arith.constant 0 : index
    %c0_9 = arith.constant 0 : index
    %7 = vector.load %arg3[%c0_7, %c0_8, %c0_9] : memref<2x32x128xf32, #tpu.memory_space<vmem>>, vector<1x32x128xf32>
    %8 = vector.shape_cast %7 : vector<1x32x128xf32> to vector<32x128xf32>
    %cst_10 = arith.constant 0.000000e+00 : f32
    %9 = vector.broadcast %cst_10 : f32 to vector<2x32xf32>
    %cst_11 = arith.constant 0.000000e+00 : f32
    %10 = vector.broadcast %cst_11 : f32 to vector<2x32xf32>
    %c0_12 = arith.constant 0 : index
    %c0_13 = arith.constant 0 : index
    %11 = vector.load %arg8[%c0_12, %c0_13] : memref<16x128xf32, #tpu.memory_space<vmem>>, vector<2x128xf32>
    %cst_14 = arith.constant dense<0.000000e+00> : vector<2x128xf32>
    %12 = tpu.matmul %9, %8, %cst_14 {dimension_numbers = #tpu.dot_dimension_numbers<[1], [0], [0], [1], [0, 0, 1, 1], [], []>} : vector<2x32xf32>, vector<32x128xf32>, vector<2x128xf32> -> vector<2x128xf32>
    %13 = arith.addf %11, %12 : vector<2x128xf32>
    %14 = arith.negf %13 : vector<2x128xf32>
    %15 = math.exp %14 : vector<2x128xf32>
    %cst_15 = arith.constant 1.000000e+00 : f32
    %16 = vector.broadcast %cst_15 : f32 to vector<2x128xf32>
    %17 = arith.addf %16, %15 : vector<2x128xf32>
    %18 = arith.divf %16, %17 : vector<2x128xf32>
    %19 = math.tanh %13 : vector<2x128xf32>
    %20 = vector.extract_strided_slice %18 {offsets = [0, 0], sizes = [2, 32], strides = [1, 1]} : vector<2x128xf32> to vector<2x32xf32>
    %21 = vector.extract_strided_slice %18 {offsets = [0, 32], sizes = [2, 32], strides = [1, 1]} : vector<2x128xf32> to vector<2x32xf32>
    %22 = vector.extract_strided_slice %19 {offsets = [0, 64], sizes = [2, 32], strides = [1, 1]} : vector<2x128xf32> to vector<2x32xf32>
    %23 = vector.extract_strided_slice %18 {offsets = [0, 96], sizes = [2, 32], strides = [1, 1]} : vector<2x128xf32> to vector<2x32xf32>
    %24 = arith.mulf %21, %10 : vector<2x32xf32>
    %25 = arith.mulf %20, %22 : vector<2x32xf32>
    %26 = arith.addf %24, %25 : vector<2x32xf32>
    %27 = math.tanh %26 : vector<2x32xf32>
    %28 = arith.mulf %23, %27 : vector<2x32xf32>
    %c0_16 = arith.constant 0 : index
    %c0_17 = arith.constant 0 : index
    %29 = vector.load %arg9[%c0_16, %c0_17] : memref<16x32xf32, #tpu.memory_space<vmem>>, vector<2x32xf32>
    tpu.vector_store %arg9[%c0_16, %c0_17], %28 {strides = array<i32>} : memref<16x32xf32, #tpu.memory_space<vmem>>, vector<2x32xf32>,
    %c2 = arith.constant 2 : index
    %c0_18 = arith.constant 0 : index
    %30 = vector.load %arg8[%c2, %c0_18] : memref<16x128xf32, #tpu.memory_space<vmem>>, vector<2x128xf32>
    %cst_19 = arith.constant dense<0.000000e+00> : vector<2x128xf32>
    %31 = tpu.matmul %28, %8, %cst_19 {dimension_numbers = #tpu.dot_dimension_numbers<[1], [0], [0], [1], [0, 0, 1, 1], [], []>} : vector<2x32xf32>, vector<32x128xf32>, vector<2x128xf32> -> vector<2x128xf32>
    %32 = arith.addf %30, %31 : vector<2x128xf32>
    %33 = arith.negf %32 : vector<2x128xf32>
    %34 = math.exp %33 : vector<2x128xf32>
    %cst_20 = arith.constant 1.000000e+00 : f32
    %35 = vector.broadcast %cst_20 : f32 to vector<2x128xf32>
    %36 = arith.addf %35, %34 : vector<2x128xf32>
    %37 = arith.divf %35, %36 : vector<2x128xf32>
    %38 = math.tanh %32 : vector<2x128xf32>
    %39 = vector.extract_strided_slice %37 {offsets = [0, 0], sizes = [2, 32], strides = [1, 1]} : vector<2x128xf32> to vector<2x32xf32>
    %40 = vector.extract_strided_slice %37 {offsets = [0, 32], sizes = [2, 32], strides = [1, 1]} : vector<2x128xf32> to vector<2x32xf32>
    %41 = vector.extract_strided_slice %38 {offsets = [0, 64], sizes = [2, 32], strides = [1, 1]} : vector<2x128xf32> to vector<2x32xf32>
    %42 = vector.extract_strided_slice %37 {offsets = [0, 96], sizes = [2, 32], strides = [1, 1]} : vector<2x128xf32> to vector<2x32xf32>
    %43 = arith.mulf %40, %26 : vector<2x32xf32>
    %44 = arith.mulf %39, %41 : vector<2x32xf32>
    %45 = arith.addf %43, %44 : vector<2x32xf32>
    %46 = math.tanh %45 : vector<2x32xf32>
    %47 = arith.mulf %42, %46 : vector<2x32xf32>
    %c2_21 = arith.constant 2 : index
    %c0_22 = arith.constant 0 : index
    %48 = vector.load %arg9[%c2_21, %c0_22] : memref<16x32xf32, #tpu.memory_space<vmem>>, vector<2x32xf32>
    tpu.vector_store %arg9[%c2_21, %c0_22], %47 {strides = array<i32>} : memref<16x32xf32, #tpu.memory_space<vmem>>, vector<2x32xf32>,
    %c4 = arith.constant 4 : index
    %c0_23 = arith.constant 0 : index
    %49 = vector.load %arg8[%c4, %c0_23] : memref<16x128xf32, #tpu.memory_space<vmem>>, vector<2x128xf32>
    %cst_24 = arith.constant dense<0.000000e+00> : vector<2x128xf32>
    %50 = tpu.matmul %47, %8, %cst_24 {dimension_numbers = #tpu.dot_dimension_numbers<[1], [0], [0], [1], [0, 0, 1, 1], [], []>} : vector<2x32xf32>, vector<32x128xf32>, vector<2x128xf32> -> vector<2x128xf32>
    %51 = arith.addf %49, %50 : vector<2x128xf32>
    %52 = arith.negf %51 : vector<2x128xf32>
    %53 = math.exp %52 : vector<2x128xf32>
    %cst_25 = arith.constant 1.000000e+00 : f32
    %54 = vector.broadcast %cst_25 : f32 to vector<2x128xf32>
    %55 = arith.addf %54, %53 : vector<2x128xf32>
    %56 = arith.divf %54, %55 : vector<2x128xf32>
    %57 = math.tanh %51 : vector<2x128xf32>
    %58 = vector.extract_strided_slice %56 {offsets = [0, 0], sizes = [2, 32], strides = [1, 1]} : vector<2x128xf32> to vector<2x32xf32>
    %59 = vector.extract_strided_slice %56 {offsets = [0, 32], sizes = [2, 32], strides = [1, 1]} : vector<2x128xf32> to vector<2x32xf32>
    %60 = vector.extract_strided_slice %57 {offsets = [0, 64], sizes = [2, 32], strides = [1, 1]} : vector<2x128xf32> to vector<2x32xf32>
    %61 = vector.extract_strided_slice %56 {offsets = [0, 96], sizes = [2, 32], strides = [1, 1]} : vector<2x128xf32> to vector<2x32xf32>
    %62 = arith.mulf %59, %45 : vector<2x32xf32>
    %63 = arith.mulf %58, %60 : vector<2x32xf32>
    %64 = arith.addf %62, %63 : vector<2x32xf32>
    %65 = math.tanh %64 : vector<2x32xf32>
    %66 = arith.mulf %61, %65 : vector<2x32xf32>
    %c4_26 = arith.constant 4 : index
    %c0_27 = arith.constant 0 : index
    %67 = vector.load %arg9[%c4_26, %c0_27] : memref<16x32xf32, #tpu.memory_space<vmem>>, vector<2x32xf32>
    tpu.vector_store %arg9[%c4_26, %c0_27], %66 {strides = array<i32>} : memref<16x32xf32, #tpu.memory_space<vmem>>, vector<2x32xf32>,
    %c6 = arith.constant 6 : index
    %c0_28 = arith.constant 0 : index
    %68 = vector.load %arg8[%c6, %c0_28] : memref<16x128xf32, #tpu.memory_space<vmem>>, vector<2x128xf32>
    %cst_29 = arith.constant dense<0.000000e+00> : vector<2x128xf32>
    %69 = tpu.matmul %66, %8, %cst_29 {dimension_numbers = #tpu.dot_dimension_numbers<[1], [0], [0], [1], [0, 0, 1, 1], [], []>} : vector<2x32xf32>, vector<32x128xf32>, vector<2x128xf32> -> vector<2x128xf32>
    %70 = arith.addf %68, %69 : vector<2x128xf32>
    %71 = arith.negf %70 : vector<2x128xf32>
    %72 = math.exp %71 : vector<2x128xf32>
    %cst_30 = arith.constant 1.000000e+00 : f32
    %73 = vector.broadcast %cst_30 : f32 to vector<2x128xf32>
    %74 = arith.addf %73, %72 : vector<2x128xf32>
    %75 = arith.divf %73, %74 : vector<2x128xf32>
    %76 = math.tanh %70 : vector<2x128xf32>
    %77 = vector.extract_strided_slice %75 {offsets = [0, 0], sizes = [2, 32], strides = [1, 1]} : vector<2x128xf32> to vector<2x32xf32>
    %78 = vector.extract_strided_slice %75 {offsets = [0, 32], sizes = [2, 32], strides = [1, 1]} : vector<2x128xf32> to vector<2x32xf32>
    %79 = vector.extract_strided_slice %76 {offsets = [0, 64], sizes = [2, 32], strides = [1, 1]} : vector<2x128xf32> to vector<2x32xf32>
    %80 = vector.extract_strided_slice %75 {offsets = [0, 96], sizes = [2, 32], strides = [1, 1]} : vector<2x128xf32> to vector<2x32xf32>
    %81 = arith.mulf %78, %64 : vector<2x32xf32>
    %82 = arith.mulf %77, %79 : vector<2x32xf32>
    %83 = arith.addf %81, %82 : vector<2x32xf32>
    %84 = math.tanh %83 : vector<2x32xf32>
    %85 = arith.mulf %80, %84 : vector<2x32xf32>
    %c6_31 = arith.constant 6 : index
    %c0_32 = arith.constant 0 : index
    %86 = vector.load %arg9[%c6_31, %c0_32] : memref<16x32xf32, #tpu.memory_space<vmem>>, vector<2x32xf32>
    tpu.vector_store %arg9[%c6_31, %c0_32], %85 {strides = array<i32>} : memref<16x32xf32, #tpu.memory_space<vmem>>, vector<2x32xf32>,
    %c8 = arith.constant 8 : index
    %c0_33 = arith.constant 0 : index
    %87 = vector.load %arg8[%c8, %c0_33] : memref<16x128xf32, #tpu.memory_space<vmem>>, vector<2x128xf32>
    %cst_34 = arith.constant dense<0.000000e+00> : vector<2x128xf32>
    %88 = tpu.matmul %85, %8, %cst_34 {dimension_numbers = #tpu.dot_dimension_numbers<[1], [0], [0], [1], [0, 0, 1, 1], [], []>} : vector<2x32xf32>, vector<32x128xf32>, vector<2x128xf32> -> vector<2x128xf32>
    %89 = arith.addf %87, %88 : vector<2x128xf32>
    %90 = arith.negf %89 : vector<2x128xf32>
    %91 = math.exp %90 : vector<2x128xf32>
    %cst_35 = arith.constant 1.000000e+00 : f32
    %92 = vector.broadcast %cst_35 : f32 to vector<2x128xf32>
    %93 = arith.addf %92, %91 : vector<2x128xf32>
    %94 = arith.divf %92, %93 : vector<2x128xf32>
    %95 = math.tanh %89 : vector<2x128xf32>
    %96 = vector.extract_strided_slice %94 {offsets = [0, 0], sizes = [2, 32], strides = [1, 1]} : vector<2x128xf32> to vector<2x32xf32>
    %97 = vector.extract_strided_slice %94 {offsets = [0, 32], sizes = [2, 32], strides = [1, 1]} : vector<2x128xf32> to vector<2x32xf32>
    %98 = vector.extract_strided_slice %95 {offsets = [0, 64], sizes = [2, 32], strides = [1, 1]} : vector<2x128xf32> to vector<2x32xf32>
    %99 = vector.extract_strided_slice %94 {offsets = [0, 96], sizes = [2, 32], strides = [1, 1]} : vector<2x128xf32> to vector<2x32xf32>
    %100 = arith.mulf %97, %83 : vector<2x32xf32>
    %101 = arith.mulf %96, %98 : vector<2x32xf32>
    %102 = arith.addf %100, %101 : vector<2x32xf32>
    %103 = math.tanh %102 : vector<2x32xf32>
    %104 = arith.mulf %99, %103 : vector<2x32xf32>
    %c8_36 = arith.constant 8 : index
    %c0_37 = arith.constant 0 : index
    %105 = vector.load %arg9[%c8_36, %c0_37] : memref<16x32xf32, #tpu.memory_space<vmem>>, vector<2x32xf32>
    tpu.vector_store %arg9[%c8_36, %c0_37], %104 {strides = array<i32>} : memref<16x32xf32, #tpu.memory_space<vmem>>, vector<2x32xf32>,
    %c10 = arith.constant 10 : index
    %c0_38 = arith.constant 0 : index
    %106 = vector.load %arg8[%c10, %c0_38] : memref<16x128xf32, #tpu.memory_space<vmem>>, vector<2x128xf32>
    %cst_39 = arith.constant dense<0.000000e+00> : vector<2x128xf32>
    %107 = tpu.matmul %104, %8, %cst_39 {dimension_numbers = #tpu.dot_dimension_numbers<[1], [0], [0], [1], [0, 0, 1, 1], [], []>} : vector<2x32xf32>, vector<32x128xf32>, vector<2x128xf32> -> vector<2x128xf32>
    %108 = arith.addf %106, %107 : vector<2x128xf32>
    %109 = arith.negf %108 : vector<2x128xf32>
    %110 = math.exp %109 : vector<2x128xf32>
    %cst_40 = arith.constant 1.000000e+00 : f32
    %111 = vector.broadcast %cst_40 : f32 to vector<2x128xf32>
    %112 = arith.addf %111, %110 : vector<2x128xf32>
    %113 = arith.divf %111, %112 : vector<2x128xf32>
    %114 = math.tanh %108 : vector<2x128xf32>
    %115 = vector.extract_strided_slice %113 {offsets = [0, 0], sizes = [2, 32], strides = [1, 1]} : vector<2x128xf32> to vector<2x32xf32>
    %116 = vector.extract_strided_slice %113 {offsets = [0, 32], sizes = [2, 32], strides = [1, 1]} : vector<2x128xf32> to vector<2x32xf32>
    %117 = vector.extract_strided_slice %114 {offsets = [0, 64], sizes = [2, 32], strides = [1, 1]} : vector<2x128xf32> to vector<2x32xf32>
    %118 = vector.extract_strided_slice %113 {offsets = [0, 96], sizes = [2, 32], strides = [1, 1]} : vector<2x128xf32> to vector<2x32xf32>
    %119 = arith.mulf %116, %102 : vector<2x32xf32>
    %120 = arith.mulf %115, %117 : vector<2x32xf32>
    %121 = arith.addf %119, %120 : vector<2x32xf32>
    %122 = math.tanh %121 : vector<2x32xf32>
    %123 = arith.mulf %118, %122 : vector<2x32xf32>
    %c10_41 = arith.constant 10 : index
    %c0_42 = arith.constant 0 : index
    %124 = vector.load %arg9[%c10_41, %c0_42] : memref<16x32xf32, #tpu.memory_space<vmem>>, vector<2x32xf32>
    tpu.vector_store %arg9[%c10_41, %c0_42], %123 {strides = array<i32>} : memref<16x32xf32, #tpu.memory_space<vmem>>, vector<2x32xf32>,
    %c12 = arith.constant 12 : index
    %c0_43 = arith.constant 0 : index
    %125 = vector.load %arg8[%c12, %c0_43] : memref<16x128xf32, #tpu.memory_space<vmem>>, vector<2x128xf32>
    %cst_44 = arith.constant dense<0.000000e+00> : vector<2x128xf32>
    %126 = tpu.matmul %123, %8, %cst_44 {dimension_numbers = #tpu.dot_dimension_numbers<[1], [0], [0], [1], [0, 0, 1, 1], [], []>} : vector<2x32xf32>, vector<32x128xf32>, vector<2x128xf32> -> vector<2x128xf32>
    %127 = arith.addf %125, %126 : vector<2x128xf32>
    %128 = arith.negf %127 : vector<2x128xf32>
    %129 = math.exp %128 : vector<2x128xf32>
    %cst_45 = arith.constant 1.000000e+00 : f32
    %130 = vector.broadcast %cst_45 : f32 to vector<2x128xf32>
    %131 = arith.addf %130, %129 : vector<2x128xf32>
    %132 = arith.divf %130, %131 : vector<2x128xf32>
    %133 = math.tanh %127 : vector<2x128xf32>
    %134 = vector.extract_strided_slice %132 {offsets = [0, 0], sizes = [2, 32], strides = [1, 1]} : vector<2x128xf32> to vector<2x32xf32>
    %135 = vector.extract_strided_slice %132 {offsets = [0, 32], sizes = [2, 32], strides = [1, 1]} : vector<2x128xf32> to vector<2x32xf32>
    %136 = vector.extract_strided_slice %133 {offsets = [0, 64], sizes = [2, 32], strides = [1, 1]} : vector<2x128xf32> to vector<2x32xf32>
    %137 = vector.extract_strided_slice %132 {offsets = [0, 96], sizes = [2, 32], strides = [1, 1]} : vector<2x128xf32> to vector<2x32xf32>
    %138 = arith.mulf %135, %121 : vector<2x32xf32>
    %139 = arith.mulf %134, %136 : vector<2x32xf32>
    %140 = arith.addf %138, %139 : vector<2x32xf32>
    %141 = math.tanh %140 : vector<2x32xf32>
    %142 = arith.mulf %137, %141 : vector<2x32xf32>
    %c12_46 = arith.constant 12 : index
    %c0_47 = arith.constant 0 : index
    %143 = vector.load %arg9[%c12_46, %c0_47] : memref<16x32xf32, #tpu.memory_space<vmem>>, vector<2x32xf32>
    tpu.vector_store %arg9[%c12_46, %c0_47], %142 {strides = array<i32>} : memref<16x32xf32, #tpu.memory_space<vmem>>, vector<2x32xf32>,
    %c14 = arith.constant 14 : index
    %c0_48 = arith.constant 0 : index
    %144 = vector.load %arg8[%c14, %c0_48] : memref<16x128xf32, #tpu.memory_space<vmem>>, vector<2x128xf32>
    %cst_49 = arith.constant dense<0.000000e+00> : vector<2x128xf32>
    %145 = tpu.matmul %142, %8, %cst_49 {dimension_numbers = #tpu.dot_dimension_numbers<[1], [0], [0], [1], [0, 0, 1, 1], [], []>} : vector<2x32xf32>, vector<32x128xf32>, vector<2x128xf32> -> vector<2x128xf32>
    %146 = arith.addf %144, %145 : vector<2x128xf32>
    %147 = arith.negf %146 : vector<2x128xf32>
    %148 = math.exp %147 : vector<2x128xf32>
    %cst_50 = arith.constant 1.000000e+00 : f32
    %149 = vector.broadcast %cst_50 : f32 to vector<2x128xf32>
    %150 = arith.addf %149, %148 : vector<2x128xf32>
    %151 = arith.divf %149, %150 : vector<2x128xf32>
    %152 = math.tanh %146 : vector<2x128xf32>
    %153 = vector.extract_strided_slice %151 {offsets = [0, 0], sizes = [2, 32], strides = [1, 1]} : vector<2x128xf32> to vector<2x32xf32>
    %154 = vector.extract_strided_slice %151 {offsets = [0, 32], sizes = [2, 32], strides = [1, 1]} : vector<2x128xf32> to vector<2x32xf32>
    %155 = vector.extract_strided_slice %152 {offsets = [0, 64], sizes = [2, 32], strides = [1, 1]} : vector<2x128xf32> to vector<2x32xf32>
    %156 = vector.extract_strided_slice %151 {offsets = [0, 96], sizes = [2, 32], strides = [1, 1]} : vector<2x128xf32> to vector<2x32xf32>
    %157 = arith.mulf %154, %140 : vector<2x32xf32>
    %158 = arith.mulf %153, %155 : vector<2x32xf32>
    %159 = arith.addf %157, %158 : vector<2x32xf32>
    %160 = math.tanh %159 : vector<2x32xf32>
    %161 = arith.mulf %156, %160 : vector<2x32xf32>
    %c14_51 = arith.constant 14 : index
    %c0_52 = arith.constant 0 : index
    %162 = vector.load %arg9[%c14_51, %c0_52] : memref<16x32xf32, #tpu.memory_space<vmem>>, vector<2x32xf32>
    tpu.vector_store %arg9[%c14_51, %c0_52], %161 {strides = array<i32>} : memref<16x32xf32, #tpu.memory_space<vmem>>, vector<2x32xf32>,
    %c0_53 = arith.constant 0 : index
    %c0_54 = arith.constant 0 : index
    %163 = vector.load %arg9[%c0_53, %c0_54] : memref<16x32xf32, #tpu.memory_space<vmem>>, vector<16x32xf32>
    %c0_55 = arith.constant 0 : index
    %c0_56 = arith.constant 0 : index
    %c0_57 = arith.constant 0 : index
    %164 = vector.load %arg2[%c0_55, %c0_56, %c0_57] : memref<1x32x128xf32, #tpu.memory_space<vmem>>, vector<1x32x128xf32>
    %165 = vector.shape_cast %164 : vector<1x32x128xf32> to vector<32x128xf32>
    %cst_58 = arith.constant dense<0.000000e+00> : vector<16x128xf32>
    %166 = tpu.matmul %163, %165, %cst_58 {dimension_numbers = #tpu.dot_dimension_numbers<[1], [0], [0], [1], [0, 0, 1, 1], [], []>} : vector<16x32xf32>, vector<32x128xf32>, vector<16x128xf32> -> vector<16x128xf32>
    %c1 = arith.constant 1 : index
    %c0_59 = arith.constant 0 : index
    %167 = vector.load %arg4[%c1, %c0_59] : memref<2x128xf32, #tpu.memory_space<vmem>>, vector<1x128xf32>
    %168 = vector.broadcast %167 : vector<1x128xf32> to vector<16x128xf32>
    %169 = arith.addf %166, %168 : vector<16x128xf32>
    %c0_60 = arith.constant 0 : index
    %c0_61 = arith.constant 0 : index
    %170 = vector.load %arg8[%c0_60, %c0_61] : memref<16x128xf32, #tpu.memory_space<vmem>>, vector<16x128xf32>
    tpu.vector_store %arg8[%c0_60, %c0_61], %169 {strides = array<i32>} : memref<16x128xf32, #tpu.memory_space<vmem>>, vector<16x128xf32>,
    %c1_62 = arith.constant 1 : index
    %c0_63 = arith.constant 0 : index
    %c0_64 = arith.constant 0 : index
    %171 = vector.load %arg3[%c1_62, %c0_63, %c0_64] : memref<2x32x128xf32, #tpu.memory_space<vmem>>, vector<1x32x128xf32>
    %172 = vector.shape_cast %171 : vector<1x32x128xf32> to vector<32x128xf32>
    %cst_65 = arith.constant 0.000000e+00 : f32
    %173 = vector.broadcast %cst_65 : f32 to vector<2x32xf32>
    %cst_66 = arith.constant 0.000000e+00 : f32
    %174 = vector.broadcast %cst_66 : f32 to vector<2x32xf32>
    %c0_67 = arith.constant 0 : index
    %c0_68 = arith.constant 0 : index
    %175 = vector.load %arg8[%c0_67, %c0_68] : memref<16x128xf32, #tpu.memory_space<vmem>>, vector<2x128xf32>
    %cst_69 = arith.constant dense<0.000000e+00> : vector<2x128xf32>
    %176 = tpu.matmul %173, %172, %cst_69 {dimension_numbers = #tpu.dot_dimension_numbers<[1], [0], [0], [1], [0, 0, 1, 1], [], []>} : vector<2x32xf32>, vector<32x128xf32>, vector<2x128xf32> -> vector<2x128xf32>
    %177 = arith.addf %175, %176 : vector<2x128xf32>
    %178 = arith.negf %177 : vector<2x128xf32>
    %179 = math.exp %178 : vector<2x128xf32>
    %cst_70 = arith.constant 1.000000e+00 : f32
    %180 = vector.broadcast %cst_70 : f32 to vector<2x128xf32>
    %181 = arith.addf %180, %179 : vector<2x128xf32>
    %182 = arith.divf %180, %181 : vector<2x128xf32>
    %183 = math.tanh %177 : vector<2x128xf32>
    %184 = vector.extract_strided_slice %182 {offsets = [0, 0], sizes = [2, 32], strides = [1, 1]} : vector<2x128xf32> to vector<2x32xf32>
    %185 = vector.extract_strided_slice %182 {offsets = [0, 32], sizes = [2, 32], strides = [1, 1]} : vector<2x128xf32> to vector<2x32xf32>
    %186 = vector.extract_strided_slice %183 {offsets = [0, 64], sizes = [2, 32], strides = [1, 1]} : vector<2x128xf32> to vector<2x32xf32>
    %187 = vector.extract_strided_slice %182 {offsets = [0, 96], sizes = [2, 32], strides = [1, 1]} : vector<2x128xf32> to vector<2x32xf32>
    %188 = arith.mulf %185, %174 : vector<2x32xf32>
    %189 = arith.mulf %184, %186 : vector<2x32xf32>
    %190 = arith.addf %188, %189 : vector<2x32xf32>
    %191 = math.tanh %190 : vector<2x32xf32>
    %192 = arith.mulf %187, %191 : vector<2x32xf32>
    %c2_71 = arith.constant 2 : index
    %c0_72 = arith.constant 0 : index
    %193 = vector.load %arg8[%c2_71, %c0_72] : memref<16x128xf32, #tpu.memory_space<vmem>>, vector<2x128xf32>
    %cst_73 = arith.constant dense<0.000000e+00> : vector<2x128xf32>
    %194 = tpu.matmul %192, %172, %cst_73 {dimension_numbers = #tpu.dot_dimension_numbers<[1], [0], [0], [1], [0, 0, 1, 1], [], []>} : vector<2x32xf32>, vector<32x128xf32>, vector<2x128xf32> -> vector<2x128xf32>
    %195 = arith.addf %193, %194 : vector<2x128xf32>
    %196 = arith.negf %195 : vector<2x128xf32>
    %197 = math.exp %196 : vector<2x128xf32>
    %cst_74 = arith.constant 1.000000e+00 : f32
    %198 = vector.broadcast %cst_74 : f32 to vector<2x128xf32>
    %199 = arith.addf %198, %197 : vector<2x128xf32>
    %200 = arith.divf %198, %199 : vector<2x128xf32>
    %201 = math.tanh %195 : vector<2x128xf32>
    %202 = vector.extract_strided_slice %200 {offsets = [0, 0], sizes = [2, 32], strides = [1, 1]} : vector<2x128xf32> to vector<2x32xf32>
    %203 = vector.extract_strided_slice %200 {offsets = [0, 32], sizes = [2, 32], strides = [1, 1]} : vector<2x128xf32> to vector<2x32xf32>
    %204 = vector.extract_strided_slice %201 {offsets = [0, 64], sizes = [2, 32], strides = [1, 1]} : vector<2x128xf32> to vector<2x32xf32>
    %205 = vector.extract_strided_slice %200 {offsets = [0, 96], sizes = [2, 32], strides = [1, 1]} : vector<2x128xf32> to vector<2x32xf32>
    %206 = arith.mulf %203, %190 : vector<2x32xf32>
    %207 = arith.mulf %202, %204 : vector<2x32xf32>
    %208 = arith.addf %206, %207 : vector<2x32xf32>
    %209 = math.tanh %208 : vector<2x32xf32>
    %210 = arith.mulf %205, %209 : vector<2x32xf32>
    %c4_75 = arith.constant 4 : index
    %c0_76 = arith.constant 0 : index
    %211 = vector.load %arg8[%c4_75, %c0_76] : memref<16x128xf32, #tpu.memory_space<vmem>>, vector<2x128xf32>
    %cst_77 = arith.constant dense<0.000000e+00> : vector<2x128xf32>
    %212 = tpu.matmul %210, %172, %cst_77 {dimension_numbers = #tpu.dot_dimension_numbers<[1], [0], [0], [1], [0, 0, 1, 1], [], []>} : vector<2x32xf32>, vector<32x128xf32>, vector<2x128xf32> -> vector<2x128xf32>
    %213 = arith.addf %211, %212 : vector<2x128xf32>
    %214 = arith.negf %213 : vector<2x128xf32>
    %215 = math.exp %214 : vector<2x128xf32>
    %cst_78 = arith.constant 1.000000e+00 : f32
    %216 = vector.broadcast %cst_78 : f32 to vector<2x128xf32>
    %217 = arith.addf %216, %215 : vector<2x128xf32>
    %218 = arith.divf %216, %217 : vector<2x128xf32>
    %219 = math.tanh %213 : vector<2x128xf32>
    %220 = vector.extract_strided_slice %218 {offsets = [0, 0], sizes = [2, 32], strides = [1, 1]} : vector<2x128xf32> to vector<2x32xf32>
    %221 = vector.extract_strided_slice %218 {offsets = [0, 32], sizes = [2, 32], strides = [1, 1]} : vector<2x128xf32> to vector<2x32xf32>
    %222 = vector.extract_strided_slice %219 {offsets = [0, 64], sizes = [2, 32], strides = [1, 1]} : vector<2x128xf32> to vector<2x32xf32>
    %223 = vector.extract_strided_slice %218 {offsets = [0, 96], sizes = [2, 32], strides = [1, 1]} : vector<2x128xf32> to vector<2x32xf32>
    %224 = arith.mulf %221, %208 : vector<2x32xf32>
    %225 = arith.mulf %220, %222 : vector<2x32xf32>
    %226 = arith.addf %224, %225 : vector<2x32xf32>
    %227 = math.tanh %226 : vector<2x32xf32>
    %228 = arith.mulf %223, %227 : vector<2x32xf32>
    %c6_79 = arith.constant 6 : index
    %c0_80 = arith.constant 0 : index
    %229 = vector.load %arg8[%c6_79, %c0_80] : memref<16x128xf32, #tpu.memory_space<vmem>>, vector<2x128xf32>
    %cst_81 = arith.constant dense<0.000000e+00> : vector<2x128xf32>
    %230 = tpu.matmul %228, %172, %cst_81 {dimension_numbers = #tpu.dot_dimension_numbers<[1], [0], [0], [1], [0, 0, 1, 1], [], []>} : vector<2x32xf32>, vector<32x128xf32>, vector<2x128xf32> -> vector<2x128xf32>
    %231 = arith.addf %229, %230 : vector<2x128xf32>
    %232 = arith.negf %231 : vector<2x128xf32>
    %233 = math.exp %232 : vector<2x128xf32>
    %cst_82 = arith.constant 1.000000e+00 : f32
    %234 = vector.broadcast %cst_82 : f32 to vector<2x128xf32>
    %235 = arith.addf %234, %233 : vector<2x128xf32>
    %236 = arith.divf %234, %235 : vector<2x128xf32>
    %237 = math.tanh %231 : vector<2x128xf32>
    %238 = vector.extract_strided_slice %236 {offsets = [0, 0], sizes = [2, 32], strides = [1, 1]} : vector<2x128xf32> to vector<2x32xf32>
    %239 = vector.extract_strided_slice %236 {offsets = [0, 32], sizes = [2, 32], strides = [1, 1]} : vector<2x128xf32> to vector<2x32xf32>
    %240 = vector.extract_strided_slice %237 {offsets = [0, 64], sizes = [2, 32], strides = [1, 1]} : vector<2x128xf32> to vector<2x32xf32>
    %241 = vector.extract_strided_slice %236 {offsets = [0, 96], sizes = [2, 32], strides = [1, 1]} : vector<2x128xf32> to vector<2x32xf32>
    %242 = arith.mulf %239, %226 : vector<2x32xf32>
    %243 = arith.mulf %238, %240 : vector<2x32xf32>
    %244 = arith.addf %242, %243 : vector<2x32xf32>
    %245 = math.tanh %244 : vector<2x32xf32>
    %246 = arith.mulf %241, %245 : vector<2x32xf32>
    %c8_83 = arith.constant 8 : index
    %c0_84 = arith.constant 0 : index
    %247 = vector.load %arg8[%c8_83, %c0_84] : memref<16x128xf32, #tpu.memory_space<vmem>>, vector<2x128xf32>
    %cst_85 = arith.constant dense<0.000000e+00> : vector<2x128xf32>
    %248 = tpu.matmul %246, %172, %cst_85 {dimension_numbers = #tpu.dot_dimension_numbers<[1], [0], [0], [1], [0, 0, 1, 1], [], []>} : vector<2x32xf32>, vector<32x128xf32>, vector<2x128xf32> -> vector<2x128xf32>
    %249 = arith.addf %247, %248 : vector<2x128xf32>
    %250 = arith.negf %249 : vector<2x128xf32>
    %251 = math.exp %250 : vector<2x128xf32>
    %cst_86 = arith.constant 1.000000e+00 : f32
    %252 = vector.broadcast %cst_86 : f32 to vector<2x128xf32>
    %253 = arith.addf %252, %251 : vector<2x128xf32>
    %254 = arith.divf %252, %253 : vector<2x128xf32>
    %255 = math.tanh %249 : vector<2x128xf32>
    %256 = vector.extract_strided_slice %254 {offsets = [0, 0], sizes = [2, 32], strides = [1, 1]} : vector<2x128xf32> to vector<2x32xf32>
    %257 = vector.extract_strided_slice %254 {offsets = [0, 32], sizes = [2, 32], strides = [1, 1]} : vector<2x128xf32> to vector<2x32xf32>
    %258 = vector.extract_strided_slice %255 {offsets = [0, 64], sizes = [2, 32], strides = [1, 1]} : vector<2x128xf32> to vector<2x32xf32>
    %259 = vector.extract_strided_slice %254 {offsets = [0, 96], sizes = [2, 32], strides = [1, 1]} : vector<2x128xf32> to vector<2x32xf32>
    %260 = arith.mulf %257, %244 : vector<2x32xf32>
    %261 = arith.mulf %256, %258 : vector<2x32xf32>
    %262 = arith.addf %260, %261 : vector<2x32xf32>
    %263 = math.tanh %262 : vector<2x32xf32>
    %264 = arith.mulf %259, %263 : vector<2x32xf32>
    %c10_87 = arith.constant 10 : index
    %c0_88 = arith.constant 0 : index
    %265 = vector.load %arg8[%c10_87, %c0_88] : memref<16x128xf32, #tpu.memory_space<vmem>>, vector<2x128xf32>
    %cst_89 = arith.constant dense<0.000000e+00> : vector<2x128xf32>
    %266 = tpu.matmul %264, %172, %cst_89 {dimension_numbers = #tpu.dot_dimension_numbers<[1], [0], [0], [1], [0, 0, 1, 1], [], []>} : vector<2x32xf32>, vector<32x128xf32>, vector<2x128xf32> -> vector<2x128xf32>
    %267 = arith.addf %265, %266 : vector<2x128xf32>
    %268 = arith.negf %267 : vector<2x128xf32>
    %269 = math.exp %268 : vector<2x128xf32>
    %cst_90 = arith.constant 1.000000e+00 : f32
    %270 = vector.broadcast %cst_90 : f32 to vector<2x128xf32>
    %271 = arith.addf %270, %269 : vector<2x128xf32>
    %272 = arith.divf %270, %271 : vector<2x128xf32>
    %273 = math.tanh %267 : vector<2x128xf32>
    %274 = vector.extract_strided_slice %272 {offsets = [0, 0], sizes = [2, 32], strides = [1, 1]} : vector<2x128xf32> to vector<2x32xf32>
    %275 = vector.extract_strided_slice %272 {offsets = [0, 32], sizes = [2, 32], strides = [1, 1]} : vector<2x128xf32> to vector<2x32xf32>
    %276 = vector.extract_strided_slice %273 {offsets = [0, 64], sizes = [2, 32], strides = [1, 1]} : vector<2x128xf32> to vector<2x32xf32>
    %277 = vector.extract_strided_slice %272 {offsets = [0, 96], sizes = [2, 32], strides = [1, 1]} : vector<2x128xf32> to vector<2x32xf32>
    %278 = arith.mulf %275, %262 : vector<2x32xf32>
    %279 = arith.mulf %274, %276 : vector<2x32xf32>
    %280 = arith.addf %278, %279 : vector<2x32xf32>
    %281 = math.tanh %280 : vector<2x32xf32>
    %282 = arith.mulf %277, %281 : vector<2x32xf32>
    %c12_91 = arith.constant 12 : index
    %c0_92 = arith.constant 0 : index
    %283 = vector.load %arg8[%c12_91, %c0_92] : memref<16x128xf32, #tpu.memory_space<vmem>>, vector<2x128xf32>
    %cst_93 = arith.constant dense<0.000000e+00> : vector<2x128xf32>
    %284 = tpu.matmul %282, %172, %cst_93 {dimension_numbers = #tpu.dot_dimension_numbers<[1], [0], [0], [1], [0, 0, 1, 1], [], []>} : vector<2x32xf32>, vector<32x128xf32>, vector<2x128xf32> -> vector<2x128xf32>
    %285 = arith.addf %283, %284 : vector<2x128xf32>
    %286 = arith.negf %285 : vector<2x128xf32>
    %287 = math.exp %286 : vector<2x128xf32>
    %cst_94 = arith.constant 1.000000e+00 : f32
    %288 = vector.broadcast %cst_94 : f32 to vector<2x128xf32>
    %289 = arith.addf %288, %287 : vector<2x128xf32>
    %290 = arith.divf %288, %289 : vector<2x128xf32>
    %291 = math.tanh %285 : vector<2x128xf32>
    %292 = vector.extract_strided_slice %290 {offsets = [0, 0], sizes = [2, 32], strides = [1, 1]} : vector<2x128xf32> to vector<2x32xf32>
    %293 = vector.extract_strided_slice %290 {offsets = [0, 32], sizes = [2, 32], strides = [1, 1]} : vector<2x128xf32> to vector<2x32xf32>
    %294 = vector.extract_strided_slice %291 {offsets = [0, 64], sizes = [2, 32], strides = [1, 1]} : vector<2x128xf32> to vector<2x32xf32>
    %295 = vector.extract_strided_slice %290 {offsets = [0, 96], sizes = [2, 32], strides = [1, 1]} : vector<2x128xf32> to vector<2x32xf32>
    %296 = arith.mulf %293, %280 : vector<2x32xf32>
    %297 = arith.mulf %292, %294 : vector<2x32xf32>
    %298 = arith.addf %296, %297 : vector<2x32xf32>
    %299 = math.tanh %298 : vector<2x32xf32>
    %300 = arith.mulf %295, %299 : vector<2x32xf32>
    %c14_95 = arith.constant 14 : index
    %c0_96 = arith.constant 0 : index
    %301 = vector.load %arg8[%c14_95, %c0_96] : memref<16x128xf32, #tpu.memory_space<vmem>>, vector<2x128xf32>
    %cst_97 = arith.constant dense<0.000000e+00> : vector<2x128xf32>
    %302 = tpu.matmul %300, %172, %cst_97 {dimension_numbers = #tpu.dot_dimension_numbers<[1], [0], [0], [1], [0, 0, 1, 1], [], []>} : vector<2x32xf32>, vector<32x128xf32>, vector<2x128xf32> -> vector<2x128xf32>
    %303 = arith.addf %301, %302 : vector<2x128xf32>
    %304 = arith.negf %303 : vector<2x128xf32>
    %305 = math.exp %304 : vector<2x128xf32>
    %cst_98 = arith.constant 1.000000e+00 : f32
    %306 = vector.broadcast %cst_98 : f32 to vector<2x128xf32>
    %307 = arith.addf %306, %305 : vector<2x128xf32>
    %308 = arith.divf %306, %307 : vector<2x128xf32>
    %309 = math.tanh %303 : vector<2x128xf32>
    %310 = vector.extract_strided_slice %308 {offsets = [0, 0], sizes = [2, 32], strides = [1, 1]} : vector<2x128xf32> to vector<2x32xf32>
    %311 = vector.extract_strided_slice %308 {offsets = [0, 32], sizes = [2, 32], strides = [1, 1]} : vector<2x128xf32> to vector<2x32xf32>
    %312 = vector.extract_strided_slice %309 {offsets = [0, 64], sizes = [2, 32], strides = [1, 1]} : vector<2x128xf32> to vector<2x32xf32>
    %313 = vector.extract_strided_slice %308 {offsets = [0, 96], sizes = [2, 32], strides = [1, 1]} : vector<2x128xf32> to vector<2x32xf32>
    %314 = arith.mulf %311, %298 : vector<2x32xf32>
    %315 = arith.mulf %310, %312 : vector<2x32xf32>
    %316 = arith.addf %314, %315 : vector<2x32xf32>
    %317 = math.tanh %316 : vector<2x32xf32>
    %318 = arith.mulf %313, %317 : vector<2x32xf32>
    %c0_99 = arith.constant 0 : index
    %c0_100 = arith.constant 0 : index
    %319 = vector.load %arg5[%c0_99, %c0_100] : memref<32x4xf32, #tpu.memory_space<vmem>>, vector<32x4xf32>
    %cst_101 = arith.constant dense<0.000000e+00> : vector<2x4xf32>
    %320 = tpu.matmul %318, %319, %cst_101 {dimension_numbers = #tpu.dot_dimension_numbers<[1], [0], [0], [1], [0, 0, 1, 1], [], []>} : vector<2x32xf32>, vector<32x4xf32>, vector<2x4xf32> -> vector<2x4xf32>
    %c0_102 = arith.constant 0 : index
    %c0_103 = arith.constant 0 : index
    %321 = vector.load %arg6[%c0_102, %c0_103] : memref<1x4xf32, #tpu.memory_space<vmem>>, vector<1x4xf32>
    %322 = vector.broadcast %321 : vector<1x4xf32> to vector<2x4xf32>
    %323 = arith.addf %320, %322 : vector<2x4xf32>
    %c0_104 = arith.constant 0 : index
    %c0_105 = arith.constant 0 : index
    %324 = vector.load %arg7[%c0_104, %c0_105] : memref<2x4xf32, #tpu.memory_space<vmem>>, vector<2x4xf32>
    tpu.vector_store %arg7[%c0_104, %c0_105], %323 {strides = array<i32>} : memref<2x4xf32, #tpu.memory_space<vmem>>, vector<2x4xf32>,
    return
  }
}

</mosaic_0001>

<llo_original>
// kernel: tpu_custom_call.1
$region0: #{tpu_custom_call.1}
  #allocation0 [shape = 'u32[]', space=smem, size = 0x4, offset = 0x4, fixed_abs, tag = 'smem constant byte address 0x4 - core index']
  #allocation1 [shape = 'u32[144,128]{1,0:T(1,128)}', space=vmem, size = 0x12000, scoped, tag = 'internal scratch']
  #allocation2 [shape = 'f32[16,128]{1,0:T(8,128)}', space=vmem, size = 0x2000, scoped, tag = 'scratch operand']
  #allocation3 [shape = 'f32[16,32]{1,0:T(8,128)}', space=vmem, size = 0x2000, scoped, tag = 'scratch operand']
  %s0 = inlined_call_operand.vmem [shape: f32[16,4], index: 0, kind: input, shape index: {}]
  %s1 = inlined_call_operand.hbm [shape: f32[4,128], index: 1, kind: input, shape index: {}]
  %s2 = inlined_call_operand.hbm [shape: f32[1,32,128], index: 2, kind: input, shape index: {}]
  %s3 = inlined_call_operand.vmem [shape: f32[2,32,128], index: 3, kind: input, shape index: {}]
  %s4 = inlined_call_operand.vmem [shape: f32[2,128], index: 4, kind: input, shape index: {}]
  %s5 = inlined_call_operand.vmem [shape: f32[32,4], index: 5, kind: input, shape index: {}]
  %s6 = inlined_call_operand.vmem [shape: f32[1,4], index: 6, kind: input, shape index: {}]
  %s7 = inlined_call_operand.hbm [shape: f32[2,4], index: 7, kind: output, shape index: {}]
  %s8 = sld [smem:[#allocation0]]
  $region46: #{tpu_custom_call.1} parent=0
    _
  %s10 = ssub.s32 1, %s8
  %s11 = scalar_select 0, %s10, %s8
  $region1: #{tpu_custom_call.1} parent=0
    #allocation4 [shape = 'u8[2048]{0}', space=vmem, size = 0x800, scoped, tag = 'input window, operand 1, single buffered']
    #allocation5 [shape = 's32[1]{0}', space=sflag, size = 0x4, scoped, tag = 'scoped memory for tpu_custom_call.1']
    #allocation6 [shape = 's32[1]{0}', space=sflag, size = 0x4, scoped, tag = 'scoped memory for tpu_custom_call.1']
    #allocation7 [shape = 'u8[16384]{0}', space=vmem, size = 0x4000, scoped, tag = 'input window, operand 2, single buffered']
    #allocation8 [shape = 's32[1]{0}', space=sflag, size = 0x4, scoped, tag = 'scoped memory for tpu_custom_call.1']
    #allocation9 [shape = 'u8[1024]{0}', space=vmem, size = 0x400, scoped, tag = 'output window, operand 0, single buffered']
    %12 = vsyncpa [#allocation5], 0
    %13 = vsyncpa [#allocation8], 0
    %14 = vsyncpa [#allocation6], 0
    // Predicated region
    $region2: #{tpu_custom_call.1} parent=1 // pred_check
      _
    $region3: #{tpu_custom_call.1} parent=1 // pred_check_branch
      %16 = sbr.rel (0) target = $region5
    $region4: #{tpu_custom_call.1} parent=1 // pred_region
      _
    $region5: #{tpu_custom_call.1} parent=1 // pred_fallthru
      _
    // Predicated region
    $region6: #{tpu_custom_call.1} parent=1 // pred_check
      _
    $region7: #{tpu_custom_call.1} parent=1 // pred_check_branch
      %18 = sbr.rel (0) target = $region9
    $region8: #{tpu_custom_call.1} parent=1 // pred_region
      %s20 = ssub.s32 64, 64
      %21 = vsyncadd [#allocation5], %s20
      %s23 = sshll.u32 [#allocation4], 4
      %s24 = int_to_ptr.vmem [resolvable:$true] %s23
      %26 = dma.hbm_to_vmem [thread:$0]  %s1, 64, %s24, [#allocation5]
    $region9: #{tpu_custom_call.1} parent=1 // pred_fallthru
      _
    // Predicated region
    $region10: #{tpu_custom_call.1} parent=1 // pred_check
      _
    $region11: #{tpu_custom_call.1} parent=1 // pred_check_branch
      %28 = sbr.rel (0) target = $region13
    $region12: #{tpu_custom_call.1} parent=1 // pred_region
      %s30 = ssub.s32 512, 512
      %31 = vsyncadd [#allocation8], %s30
      %s32 = sshll.u32 [#allocation7], 4
      %s33 = int_to_ptr.vmem [resolvable:$true] %s32
      %38 = dma.hbm_to_vmem [thread:$0]  %s2, 512, %s33, [#allocation8], 128, 128, 8
    $region13: #{tpu_custom_call.1} parent=1 // pred_fallthru
      _
    // Predicated region
    $region14: #{tpu_custom_call.1} parent=1 // pred_check
      _
    $region15: #{tpu_custom_call.1} parent=1 // pred_check_branch
      %40 = sbr.rel (0) target = $region17
    $region16: #{tpu_custom_call.1} parent=1 // pred_region
      _
    $region17: #{tpu_custom_call.1} parent=1 // pred_fallthru
      _
    // Predicated region
    $region18: #{tpu_custom_call.1} parent=1 // pred_check
      _
    $region19: #{tpu_custom_call.1} parent=1 // pred_check_branch
      %42 = sbr.rel (0) target = $region21
    $region20: #{tpu_custom_call.1} parent=1 // pred_region
      _
    $region21: #{tpu_custom_call.1} parent=1 // pred_fallthru
      _
    // Predicated region
    $region22: #{tpu_custom_call.1} parent=1 // pred_check
      _
    $region23: #{tpu_custom_call.1} parent=1 // pred_check_branch
      %44 = sbr.rel (0) target = $region25
    $region24: #{tpu_custom_call.1} parent=1 // pred_region
      _
    $region25: #{tpu_custom_call.1} parent=1 // pred_fallthru
      _
    // Predicated region
    $region26: #{tpu_custom_call.1} parent=1 // pred_check
      _
    $region27: #{tpu_custom_call.1} parent=1 // pred_check_branch
      %46 = sbr.rel (0) target = $region29
    $region28: #{tpu_custom_call.1} parent=1 // pred_region
      _
    $region29: #{tpu_custom_call.1} parent=1 // pred_fallthru
      _
    // Predicated region
    $region30: #{tpu_custom_call.1} parent=1 // pred_check
      _
    $region31: #{tpu_custom_call.1} parent=1 // pred_check_branch
      %48 = sbr.rel (0) target = $region33
    $region32: #{tpu_custom_call.1} parent=1 // pred_region
      %49 = dma.done [#allocation5], 64
    $region33: #{tpu_custom_call.1} parent=1 // pred_fallthru
      _
    // Predicated region
    $region34: #{tpu_custom_call.1} parent=1 // pred_check
      _
    $region35: #{tpu_custom_call.1} parent=1 // pred_check_branch
      %51 = sbr.rel (0) target = $region37
    $region36: #{tpu_custom_call.1} parent=1 // pred_region
      %52 = dma.done [#allocation8], 512
    $region37: #{tpu_custom_call.1} parent=1 // pred_fallthru
      _
    %v53 = vld [vmem:[%s0] sm:$0xff]
    %v54 = vld [vmem:[%s0 + $0x8] sm:$0xff]
    %v55 = vld [vmem:[#allocation4] sm:$0xf]
    %v56 = vld [vmem:[%s4] sm:$0x1]
    %v57 = vlaneseq
    %v58 = vshrl.u32 %v57, 7
    %v59 = vsub.s32 0, %v58
    %v60 = vrot.slane %v56, %v59
    %vm61 = vcmask 31744
    %v63 = vsel %vm61, %v53, 0
    %v66 = vsel %vm61, %v54, 0
    %vm68 = vcmask 1043456
    %v70 = vsel %vm68, %v55, 0
    %72 = vmatprep.subr.mxu0 0.0
    %73 = vmatpush1.msra.mxu0 %v70
    %74 = vmatprep.subr.mxu0 0.0
    %75 = vmatpush1.msra.mxu0 0.0
    %76 = vmatprep.subr.mxu0 0.0
    %77 = vmatpush1.msra.mxu0 0.0
    %78 = vmatprep.subr.mxu0 0.0
    %79 = vmatpush1.msra.mxu0 0.0
    %80 = vmatprep.subr.mxu0 0.0
    %81 = vmatpush1.msra.mxu0 0.0
    %82 = vmatprep.subr.mxu0 0.0
    %83 = vmatpush1.msra.mxu0 0.0
    %84 = vmatprep.subr.mxu0 0.0
    %85 = vmatpush1.msra.mxu0 0.0
    %86 = vmatprep.subr.mxu0 0.0
    %87 = vmatpush1.msra.mxu0 0.0
    %88 = vmatprep.subr.mxu0 0.0
    %89 = vmatpush1.msra.mxu0 0.0
    %90 = vmatprep.subr.mxu0 0.0
    %91 = vmatpush1.msra.mxu0 0.0
    %92 = vmatprep.subr.mxu0 0.0
    %93 = vmatpush1.msra.mxu0 0.0
    %94 = vmatprep.subr.mxu0 0.0
    %95 = vmatpush1.msra.mxu0 0.0
    %96 = vmatprep.subr.mxu0 0.0
    %97 = vmatpush1.msra.mxu0 0.0
    %98 = vmatprep.subr.mxu0 0.0
    %99 = vmatpush1.msra.mxu0 0.0
    %100 = vmatprep.subr.mxu0 0.0
    %101 = vmatpush1.msra.mxu0 0.0
    %102 = vmatprep.subr.mxu0 0.0
    %103 = vmatpush1.msra.mxu0 0.0
    %104 = vmatprep.subr.mxu0 0.0
    %105 = vmatpush1.msra.mxu0 0.0
    %106 = vmatprep.subr.mxu0 0.0
    %107 = vmatpush1.msra.mxu0 0.0
    %108 = vmatprep.subr.mxu0 0.0
    %109 = vmatpush1.msra.mxu0 0.0
    %110 = vmatprep.subr.mxu0 0.0
    %111 = vmatpush1.msra.mxu0 0.0
    %112 = vmatprep.subr.mxu0 0.0
    %113 = vmatpush1.msra.mxu0 0.0
    %114 = vmatprep.subr.mxu0 0.0
    %115 = vmatpush1.msra.mxu0 0.0
    %116 = vmatprep.subr.mxu0 0.0
    %117 = vmatpush1.msra.mxu0 0.0
    %118 = vmatprep.subr.mxu0 0.0
    %119 = vmatpush1.msra.mxu0 0.0
    %120 = vmatprep.subr.mxu0 0.0
    %121 = vmatpush1.msra.mxu0 0.0
    %122 = vmatprep.subr.mxu0 0.0
    %123 = vmatpush1.msra.mxu0 0.0
    %124 = vmatprep.subr.mxu0 0.0
    %125 = vmatpush1.msra.mxu0 0.0
    %126 = vmatprep.subr.mxu0 0.0
    %127 = vmatpush1.msra.mxu0 0.0
    %128 = vmatprep.subr.mxu0 0.0
    %129 = vmatpush1.msra.mxu0 0.0
    %130 = vmatprep.subr.mxu0 0.0
    %131 = vmatpush1.msra.mxu0 0.0
    %132 = vmatprep.subr.mxu0 0.0
    %133 = vmatpush1.msra.mxu0 0.0
    %134 = vmatprep.subr.mxu0 0.0
    %135 = vmatpush1.msra.mxu0 0.0
    %136 = vmatprep.mubr.f32.mxu0 0.0
    %137 = vmatmul.mubr.f32.gmra.mrb[0].mxu0 %v63
    %v138 = vpop.f32.mrb[0].mxu0
    %v139 = vadd.f32 %v60, %v138
    %v140 = vpop.f32.mrb[0].mxu0
    %141 = vmatprep.mubr.f32.mxu0 0.0
    %142 = vmatmul.mubr.f32.gmra.mrb[0].mxu0 %v66
    %v143 = vpop.f32.mrb[0].mxu0
    %v144 = vadd.f32 %v60, %v143
    %v145 = vpop.f32.mrb[0].mxu0
    %146 = vdwg.mxu0
    %147 = vst [vmem:[#allocation2] sm:$0xff] %v139
    %148 = vst [vmem:[#allocation2 + $0x8] sm:$0xff] %v144
    %v149 = vld [vmem:[%s3] sm:$0xff]
    %v150 = vld [vmem:[%s3 + $0x8] sm:$0xff]
    %v151 = vld [vmem:[%s3 + $0x10] sm:$0xff]
    %v152 = vld [vmem:[%s3 + $0x18] sm:$0xff]
    %v153 = vld [vmem:[#allocation2] sm:$0x3]
    %vm154 = vcmask 261120
    %v156 = vsel %vm154, 0.0, 0
    %158 = vmatprep.subr.mxu0 0.0
    %159 = vmatpush1.msra.mxu0 %v149
    %160 = vmatprep.subr.mxu0 0.0
    %161 = vmatpush1.msra.mxu0 %v150
    %162 = vmatprep.subr.mxu0 0.0
    %163 = vmatpush1.msra.mxu0 %v151
    %164 = vmatprep.subr.mxu0 0.0
    %165 = vmatpush1.msra.mxu0 %v152
    %166 = vmatprep.subr.mxu0 0.0
    %167 = vmatpush1.msra.mxu0 0.0
    %168 = vmatprep.subr.mxu0 0.0
    %169 = vmatpush1.msra.mxu0 0.0
    %170 = vmatprep.subr.mxu0 0.0
    %171 = vmatpush1.msra.mxu0 0.0
    %172 = vmatprep.subr.mxu0 0.0
    %173 = vmatpush1.msra.mxu0 0.0
    %174 = vmatprep.subr.mxu0 0.0
    %175 = vmatpush1.msra.mxu0 0.0
    %176 = vmatprep.subr.mxu0 0.0
    %177 = vmatpush1.msra.mxu0 0.0
    %178 = vmatprep.subr.mxu0 0.0
    %179 = vmatpush1.msra.mxu0 0.0
    %180 = vmatprep.subr.mxu0 0.0
    %181 = vmatpush1.msra.mxu0 0.0
    %182 = vmatprep.subr.mxu0 0.0
    %183 = vmatpush1.msra.mxu0 0.0
    %184 = vmatprep.subr.mxu0 0.0
    %185 = vmatpush1.msra.mxu0 0.0
    %186 = vmatprep.subr.mxu0 0.0
    %187 = vmatpush1.msra.mxu0 0.0
    %188 = vmatprep.subr.mxu0 0.0
    %189 = vmatpush1.msra.mxu0 0.0
    %190 = vmatprep.subr.mxu0 0.0
    %191 = vmatpush1.msra.mxu0 0.0
    %192 = vmatprep.subr.mxu0 0.0
    %193 = vmatpush1.msra.mxu0 0.0
    %194 = vmatprep.subr.mxu0 0.0
    %195 = vmatpush1.msra.mxu0 0.0
    %196 = vmatprep.subr.mxu0 0.0
    %197 = vmatpush1.msra.mxu0 0.0
    %198 = vmatprep.subr.mxu0 0.0
    %199 = vmatpush1.msra.mxu0 0.0
    %200 = vmatprep.subr.mxu0 0.0
    %201 = vmatpush1.msra.mxu0 0.0
    %202 = vmatprep.subr.mxu0 0.0
    %203 = vmatpush1.msra.mxu0 0.0
    %204 = vmatprep.subr.mxu0 0.0
    %205 = vmatpush1.msra.mxu0 0.0
    %206 = vmatprep.subr.mxu0 0.0
    %207 = vmatpush1.msra.mxu0 0.0
    %208 = vmatprep.subr.mxu0 0.0
    %209 = vmatpush1.msra.mxu0 0.0
    %210 = vmatprep.subr.mxu0 0.0
    %211 = vmatpush1.msra.mxu0 0.0
    %212 = vmatprep.subr.mxu0 0.0
    %213 = vmatpush1.msra.mxu0 0.0
    %214 = vmatprep.subr.mxu0 0.0
    %215 = vmatpush1.msra.mxu0 0.0
    %216 = vmatprep.subr.mxu0 0.0
    %217 = vmatpush1.msra.mxu0 0.0
    %218 = vmatprep.subr.mxu0 0.0
    %219 = vmatpush1.msra.mxu0 0.0
    %220 = vmatprep.subr.mxu0 0.0
    %221 = vmatpush1.msra.mxu0 0.0
    %222 = vmatprep.mubr.f32.mxu0 0.0
    %223 = vmatmul.mubr.f32.gmra.mrb[0].mxu0 %v156
    %v224 = vpop.f32.mrb[0].mxu0
    %v225 = vadd.f32 0.0, %v224
    %v226 = vpop.f32.mrb[0].mxu0
    %227 = vdwg.mxu0
    %v228 = vadd.f32 %v153, %v225
    %v229 = vxor.u32 %v228, 2147483648
    %v230 = vmul.f32 %v229, 1.442695
    %v231 = vpow.pop %v230
    %v232 = vadd.f32 %v231, 1.0
    %v233 = vrcp.pop %v232
    %v234 = vmul.f32 1.0, %v233
    %v235 = vtanh.pop %v228
    %v236 = vmul.f32 %v234, 0.0
    %238 = vrot.lane.b32.xlu0 %v235, 64
    %v239 = vpop.permute.xlu0 %238
    %v241 = vmul.f32 %v234, %v239
    %243 = vrot.lane.b32.xlu0 %v241, 32
    %v244 = vpop.permute.xlu0 %243
    %v246 = vadd.f32 %v236, %v244
    %v247 = vtanh.pop %v246
    %249 = vrot.lane.b32.xlu0 %v247, 64
    %v250 = vpop.permute.xlu0 %249
    %v252 = vmul.f32 %v234, %v250
    %254 = vrot.lane.b32.xlu0 %v252, 32
    %v255 = vpop.permute.xlu0 %254
    %vm257 = vcmask 254976
    %258 = vst.msk [vmem:[#allocation3] sm:$0x3] %vm257, %v255
    %v259 = vld [vmem:[#allocation2 + $0x2] sm:$0x3]
    %v260 = vsel %vm154, %v255, 0
    %262 = vmatprep.subr.mxu0 0.0
    %263 = vmatpush1.msra.mxu0 %v149
    %264 = vmatprep.subr.mxu0 0.0
    %265 = vmatpush1.msra.mxu0 %v150
    %266 = vmatprep.subr.mxu0 0.0
    %267 = vmatpush1.msra.mxu0 %v151
    %268 = vmatprep.subr.mxu0 0.0
    %269 = vmatpush1.msra.mxu0 %v152
    %270 = vmatprep.subr.mxu0 0.0
    %271 = vmatpush1.msra.mxu0 0.0
    %272 = vmatprep.subr.mxu0 0.0
    %273 = vmatpush1.msra.mxu0 0.0
    %274 = vmatprep.subr.mxu0 0.0
    %275 = vmatpush1.msra.mxu0 0.0
    %276 = vmatprep.subr.mxu0 0.0
    %277 = vmatpush1.msra.mxu0 0.0
    %278 = vmatprep.subr.mxu0 0.0
    %279 = vmatpush1.msra.mxu0 0.0
    %280 = vmatprep.subr.mxu0 0.0
    %281 = vmatpush1.msra.mxu0 0.0
    %282 = vmatprep.subr.mxu0 0.0
    %283 = vmatpush1.msra.mxu0 0.0
    %284 = vmatprep.subr.mxu0 0.0
    %285 = vmatpush1.msra.mxu0 0.0
    %286 = vmatprep.subr.mxu0 0.0
    %287 = vmatpush1.msra.mxu0 0.0
    %288 = vmatprep.subr.mxu0 0.0
    %289 = vmatpush1.msra.mxu0 0.0
    %290 = vmatprep.subr.mxu0 0.0
    %291 = vmatpush1.msra.mxu0 0.0
    %292 = vmatprep.subr.mxu0 0.0
    %293 = vmatpush1.msra.mxu0 0.0
    %294 = vmatprep.subr.mxu0 0.0
    %295 = vmatpush1.msra.mxu0 0.0
    %296 = vmatprep.subr.mxu0 0.0
    %297 = vmatpush1.msra.mxu0 0.0
    %298 = vmatprep.subr.mxu0 0.0
    %299 = vmatpush1.msra.mxu0 0.0
    %300 = vmatprep.subr.mxu0 0.0
    %301 = vmatpush1.msra.mxu0 0.0
    %302 = vmatprep.subr.mxu0 0.0
    %303 = vmatpush1.msra.mxu0 0.0
    %304 = vmatprep.subr.mxu0 0.0
    %305 = vmatpush1.msra.mxu0 0.0
    %306 = vmatprep.subr.mxu0 0.0
    %307 = vmatpush1.msra.mxu0 0.0
    %308 = vmatprep.subr.mxu0 0.0
    %309 = vmatpush1.msra.mxu0 0.0
    %310 = vmatprep.subr.mxu0 0.0
    %311 = vmatpush1.msra.mxu0 0.0
    %312 = vmatprep.subr.mxu0 0.0
    %313 = vmatpush1.msra.mxu0 0.0
    %314 = vmatprep.subr.mxu0 0.0
    %315 = vmatpush1.msra.mxu0 0.0
    %316 = vmatprep.subr.mxu0 0.0
    %317 = vmatpush1.msra.mxu0 0.0
    %318 = vmatprep.subr.mxu0 0.0
    %319 = vmatpush1.msra.mxu0 0.0
    %320 = vmatprep.subr.mxu0 0.0
    %321 = vmatpush1.msra.mxu0 0.0
    %322 = vmatprep.subr.mxu0 0.0
    %323 = vmatpush1.msra.mxu0 0.0
    %324 = vmatprep.subr.mxu0 0.0
    %325 = vmatpush1.msra.mxu0 0.0
    %326 = vmatprep.mubr.f32.mxu0 0.0
    %327 = vmatmul.mubr.f32.gmra.mrb[0].mxu0 %v260
    %v328 = vpop.f32.mrb[0].mxu0
    %v329 = vadd.f32 0.0, %v328
    %v330 = vpop.f32.mrb[0].mxu0
    %331 = vdwg.mxu0
    %v332 = vadd.f32 %v259, %v329
    %v333 = vxor.u32 %v332, 2147483648
    %v334 = vmul.f32 %v333, 1.442695
    %v335 = vpow.pop %v334
    %v336 = vadd.f32 %v335, 1.0
    %v337 = vrcp.pop %v336
    %v338 = vmul.f32 1.0, %v337
    %v339 = vtanh.pop %v332
    %v340 = vmul.f32 %v338, %v246
    %342 = vrot.lane.b32.xlu0 %v339, 64
    %v343 = vpop.permute.xlu0 %342
    %v345 = vmul.f32 %v338, %v343
    %347 = vrot.lane.b32.xlu0 %v345, 32
    %v348 = vpop.permute.xlu0 %347
    %v350 = vadd.f32 %v340, %v348
    %v351 = vtanh.pop %v350
    %353 = vrot.lane.b32.xlu0 %v351, 64
    %v354 = vpop.permute.xlu0 %353
    %v356 = vmul.f32 %v338, %v354
    %358 = vrot.lane.b32.xlu0 %v356, 32
    %v359 = vpop.permute.xlu0 %358
    %361 = vst.msk [vmem:[#allocation3 + $0x2] sm:$0x3] %vm257, %v359
    %v362 = vld [vmem:[#allocation2 + $0x4] sm:$0x3]
    %v363 = vsel %vm154, %v359, 0
    %365 = vmatprep.subr.mxu0 0.0
    %366 = vmatpush1.msra.mxu0 %v149
    %367 = vmatprep.subr.mxu0 0.0
    %368 = vmatpush1.msra.mxu0 %v150
    %369 = vmatprep.subr.mxu0 0.0
    %370 = vmatpush1.msra.mxu0 %v151
    %371 = vmatprep.subr.mxu0 0.0
    %372 = vmatpush1.msra.mxu0 %v152
    %373 = vmatprep.subr.mxu0 0.0
    %374 = vmatpush1.msra.mxu0 0.0
    %375 = vmatprep.subr.mxu0 0.0
    %376 = vmatpush1.msra.mxu0 0.0
    %377 = vmatprep.subr.mxu0 0.0
    %378 = vmatpush1.msra.mxu0 0.0
    %379 = vmatprep.subr.mxu0 0.0
    %380 = vmatpush1.msra.mxu0 0.0
    %381 = vmatprep.subr.mxu0 0.0
    %382 = vmatpush1.msra.mxu0 0.0
    %383 = vmatprep.subr.mxu0 0.0
    %384 = vmatpush1.msra.mxu0 0.0
    %385 = vmatprep.subr.mxu0 0.0
    %386 = vmatpush1.msra.mxu0 0.0
    %387 = vmatprep.subr.mxu0 0.0
    %388 = vmatpush1.msra.mxu0 0.0
    %389 = vmatprep.subr.mxu0 0.0
    %390 = vmatpush1.msra.mxu0 0.0
    %391 = vmatprep.subr.mxu0 0.0
    %392 = vmatpush1.msra.mxu0 0.0
    %393 = vmatprep.subr.mxu0 0.0
    %394 = vmatpush1.msra.mxu0 0.0
    %395 = vmatprep.subr.mxu0 0.0
    %396 = vmatpush1.msra.mxu0 0.0
    %397 = vmatprep.subr.mxu0 0.0
    %398 = vmatpush1.msra.mxu0 0.0
    %399 = vmatprep.subr.mxu0 0.0
    %400 = vmatpush1.msra.mxu0 0.0
    %401 = vmatprep.subr.mxu0 0.0
    %402 = vmatpush1.msra.mxu0 0.0
    %403 = vmatprep.subr.mxu0 0.0
    %404 = vmatpush1.msra.mxu0 0.0
    %405 = vmatprep.subr.mxu0 0.0
    %406 = vmatpush1.msra.mxu0 0.0
    %407 = vmatprep.subr.mxu0 0.0
    %408 = vmatpush1.msra.mxu0 0.0
    %409 = vmatprep.subr.mxu0 0.0
    %410 = vmatpush1.msra.mxu0 0.0
    %411 = vmatprep.subr.mxu0 0.0
    %412 = vmatpush1.msra.mxu0 0.0
    %413 = vmatprep.subr.mxu0 0.0
    %414 = vmatpush1.msra.mxu0 0.0
    %415 = vmatprep.subr.mxu0 0.0
    %416 = vmatpush1.msra.mxu0 0.0
    %417 = vmatprep.subr.mxu0 0.0
    %418 = vmatpush1.msra.mxu0 0.0
    %419 = vmatprep.subr.mxu0 0.0
    %420 = vmatpush1.msra.mxu0 0.0
    %421 = vmatprep.subr.mxu0 0.0
    %422 = vmatpush1.msra.mxu0 0.0
    %423 = vmatprep.subr.mxu0 0.0
    %424 = vmatpush1.msra.mxu0 0.0
    %425 = vmatprep.subr.mxu0 0.0
    %426 = vmatpush1.msra.mxu0 0.0
    %427 = vmatprep.subr.mxu0 0.0
    %428 = vmatpush1.msra.mxu0 0.0
    %429 = vmatprep.mubr.f32.mxu0 0.0
    %430 = vmatmul.mubr.f32.gmra.mrb[0].mxu0 %v363
    %v431 = vpop.f32.mrb[0].mxu0
    %v432 = vadd.f32 0.0, %v431
    %v433 = vpop.f32.mrb[0].mxu0
    %434 = vdwg.mxu0
    %v435 = vadd.f32 %v362, %v432
    %v436 = vxor.u32 %v435, 2147483648
    %v437 = vmul.f32 %v436, 1.442695
    %v438 = vpow.pop %v437
    %v439 = vadd.f32 %v438, 1.0
    %v440 = vrcp.pop %v439
    %v441 = vmul.f32 1.0, %v440
    %v442 = vtanh.pop %v435
    %v443 = vmul.f32 %v441, %v350
    %445 = vrot.lane.b32.xlu0 %v442, 64
    %v446 = vpop.permute.xlu0 %445
    %v448 = vmul.f32 %v441, %v446
    %450 = vrot.lane.b32.xlu0 %v448, 32
    %v451 = vpop.permute.xlu0 %450
    %v453 = vadd.f32 %v443, %v451
    %v454 = vtanh.pop %v453
    %456 = vrot.lane.b32.xlu0 %v454, 64
    %v457 = vpop.permute.xlu0 %456
    %v459 = vmul.f32 %v441, %v457
    %461 = vrot.lane.b32.xlu0 %v459, 32
    %v462 = vpop.permute.xlu0 %461
    %464 = vst.msk [vmem:[#allocation3 + $0x4] sm:$0x3] %vm257, %v462
    %v465 = vld [vmem:[#allocation2 + $0x6] sm:$0x3]
    %v466 = vsel %vm154, %v462, 0
    %468 = vmatprep.subr.mxu0 0.0
    %469 = vmatpush1.msra.mxu0 %v149
    %470 = vmatprep.subr.mxu0 0.0
    %471 = vmatpush1.msra.mxu0 %v150
    %472 = vmatprep.subr.mxu0 0.0
    %473 = vmatpush1.msra.mxu0 %v151
    %474 = vmatprep.subr.mxu0 0.0
    %475 = vmatpush1.msra.mxu0 %v152
    %476 = vmatprep.subr.mxu0 0.0
    %477 = vmatpush1.msra.mxu0 0.0
    %478 = vmatprep.subr.mxu0 0.0
    %479 = vmatpush1.msra.mxu0 0.0
    %480 = vmatprep.subr.mxu0 0.0
    %481 = vmatpush1.msra.mxu0 0.0
    %482 = vmatprep.subr.mxu0 0.0
    %483 = vmatpush1.msra.mxu0 0.0
    %484 = vmatprep.subr.mxu0 0.0
    %485 = vmatpush1.msra.mxu0 0.0
    %486 = vmatprep.subr.mxu0 0.0
    %487 = vmatpush1.msra.mxu0 0.0
    %488 = vmatprep.subr.mxu0 0.0
    %489 = vmatpush1.msra.mxu0 0.0
    %490 = vmatprep.subr.mxu0 0.0
    %491 = vmatpush1.msra.mxu0 0.0
    %492 = vmatprep.subr.mxu0 0.0
    %493 = vmatpush1.msra.mxu0 0.0
    %494 = vmatprep.subr.mxu0 0.0
    %495 = vmatpush1.msra.mxu0 0.0
    %496 = vmatprep.subr.mxu0 0.0
    %497 = vmatpush1.msra.mxu0 0.0
    %498 = vmatprep.subr.mxu0 0.0
    %499 = vmatpush1.msra.mxu0 0.0
    %500 = vmatprep.subr.mxu0 0.0
    %501 = vmatpush1.msra.mxu0 0.0
    %502 = vmatprep.subr.mxu0 0.0
    %503 = vmatpush1.msra.mxu0 0.0
    %504 = vmatprep.subr.mxu0 0.0
    %505 = vmatpush1.msra.mxu0 0.0
    %506 = vmatprep.subr.mxu0 0.0
    %507 = vmatpush1.msra.mxu0 0.0
    %508 = vmatprep.subr.mxu0 0.0
    %509 = vmatpush1.msra.mxu0 0.0
    %510 = vmatprep.subr.mxu0 0.0
    %511 = vmatpush1.msra.mxu0 0.0
    %512 = vmatprep.subr.mxu0 0.0
    %513 = vmatpush1.msra.mxu0 0.0
    %514 = vmatprep.subr.mxu0 0.0
    %515 = vmatpush1.msra.mxu0 0.0
    %516 = vmatprep.subr.mxu0 0.0
    %517 = vmatpush1.msra.mxu0 0.0
    %518 = vmatprep.subr.mxu0 0.0
    %519 = vmatpush1.msra.mxu0 0.0
    %520 = vmatprep.subr.mxu0 0.0
    %521 = vmatpush1.msra.mxu0 0.0
    %522 = vmatprep.subr.mxu0 0.0
    %523 = vmatpush1.msra.mxu0 0.0
    %524 = vmatprep.subr.mxu0 0.0
    %525 = vmatpush1.msra.mxu0 0.0
    %526 = vmatprep.subr.mxu0 0.0
    %527 = vmatpush1.msra.mxu0 0.0
    %528 = vmatprep.subr.mxu0 0.0
    %529 = vmatpush1.msra.mxu0 0.0
    %530 = vmatprep.subr.mxu0 0.0
    %531 = vmatpush1.msra.mxu0 0.0
    %532 = vmatprep.mubr.f32.mxu0 0.0
    %533 = vmatmul.mubr.f32.gmra.mrb[0].mxu0 %v466
    %v534 = vpop.f32.mrb[0].mxu0
    %v535 = vadd.f32 0.0, %v534
    %v536 = vpop.f32.mrb[0].mxu0
    %537 = vdwg.mxu0
    %v538 = vadd.f32 %v465, %v535
    %v539 = vxor.u32 %v538, 2147483648
    %v540 = vmul.f32 %v539, 1.442695
    %v541 = vpow.pop %v540
    %v542 = vadd.f32 %v541, 1.0
    %v543 = vrcp.pop %v542
    %v544 = vmul.f32 1.0, %v543
    %v545 = vtanh.pop %v538
    %v546 = vmul.f32 %v544, %v453
    %548 = vrot.lane.b32.xlu0 %v545, 64
    %v549 = vpop.permute.xlu0 %548
    %v551 = vmul.f32 %v544, %v549
    %553 = vrot.lane.b32.xlu0 %v551, 32
    %v554 = vpop.permute.xlu0 %553
    %v556 = vadd.f32 %v546, %v554
    %v557 = vtanh.pop %v556
    %559 = vrot.lane.b32.xlu0 %v557, 64
    %v560 = vpop.permute.xlu0 %559
    %v562 = vmul.f32 %v544, %v560
    %564 = vrot.lane.b32.xlu0 %v562, 32
    %v565 = vpop.permute.xlu0 %564
    %567 = vst.msk [vmem:[#allocation3 + $0x6] sm:$0x3] %vm257, %v565
    %v568 = vld [vmem:[#allocation2 + $0x8] sm:$0x3]
    %v569 = vsel %vm154, %v565, 0
    %571 = vmatprep.subr.mxu0 0.0
    %572 = vmatpush1.msra.mxu0 %v149
    %573 = vmatprep.subr.mxu0 0.0
    %574 = vmatpush1.msra.mxu0 %v150
    %575 = vmatprep.subr.mxu0 0.0
    %576 = vmatpush1.msra.mxu0 %v151
    %577 = vmatprep.subr.mxu0 0.0
    %578 = vmatpush1.msra.mxu0 %v152
    %579 = vmatprep.subr.mxu0 0.0
    %580 = vmatpush1.msra.mxu0 0.0
    %581 = vmatprep.subr.mxu0 0.0
    %582 = vmatpush1.msra.mxu0 0.0
    %583 = vmatprep.subr.mxu0 0.0
    %584 = vmatpush1.msra.mxu0 0.0
    %585 = vmatprep.subr.mxu0 0.0
    %586 = vmatpush1.msra.mxu0 0.0
    %587 = vmatprep.subr.mxu0 0.0
    %588 = vmatpush1.msra.mxu0 0.0
    %589 = vmatprep.subr.mxu0 0.0
    %590 = vmatpush1.msra.mxu0 0.0
    %591 = vmatprep.subr.mxu0 0.0
    %592 = vmatpush1.msra.mxu0 0.0
    %593 = vmatprep.subr.mxu0 0.0
    %594 = vmatpush1.msra.mxu0 0.0
    %595 = vmatprep.subr.mxu0 0.0
    %596 = vmatpush1.msra.mxu0 0.0
    %597 = vmatprep.subr.mxu0 0.0
    %598 = vmatpush1.msra.mxu0 0.0
    %599 = vmatprep.subr.mxu0 0.0
    %600 = vmatpush1.msra.mxu0 0.0
    %601 = vmatprep.subr.mxu0 0.0
    %602 = vmatpush1.msra.mxu0 0.0
    %603 = vmatprep.subr.mxu0 0.0
    %604 = vmatpush1.msra.mxu0 0.0
    %605 = vmatprep.subr.mxu0 0.0
    %606 = vmatpush1.msra.mxu0 0.0
    %607 = vmatprep.subr.mxu0 0.0
    %608 = vmatpush1.msra.mxu0 0.0
    %609 = vmatprep.subr.mxu0 0.0
    %610 = vmatpush1.msra.mxu0 0.0
    %611 = vmatprep.subr.mxu0 0.0
    %612 = vmatpush1.msra.mxu0 0.0
    %613 = vmatprep.subr.mxu0 0.0
    %614 = vmatpush1.msra.mxu0 0.0
    %615 = vmatprep.subr.mxu0 0.0
    %616 = vmatpush1.msra.mxu0 0.0
    %617 = vmatprep.subr.mxu0 0.0
    %618 = vmatpush1.msra.mxu0 0.0
    %619 = vmatprep.subr.mxu0 0.0
    %620 = vmatpush1.msra.mxu0 0.0
    %621 = vmatprep.subr.mxu0 0.0
    %622 = vmatpush1.msra.mxu0 0.0
    %623 = vmatprep.subr.mxu0 0.0
    %624 = vmatpush1.msra.mxu0 0.0
    %625 = vmatprep.subr.mxu0 0.0
    %626 = vmatpush1.msra.mxu0 0.0
    %627 = vmatprep.subr.mxu0 0.0
    %628 = vmatpush1.msra.mxu0 0.0
    %629 = vmatprep.subr.mxu0 0.0
    %630 = vmatpush1.msra.mxu0 0.0
    %631 = vmatprep.subr.mxu0 0.0
    %632 = vmatpush1.msra.mxu0 0.0
    %633 = vmatprep.subr.mxu0 0.0
    %634 = vmatpush1.msra.mxu0 0.0
    %635 = vmatprep.mubr.f32.mxu0 0.0
    %636 = vmatmul.mubr.f32.gmra.mrb[0].mxu0 %v569
    %v637 = vpop.f32.mrb[0].mxu0
    %v638 = vadd.f32 0.0, %v637
    %v639 = vpop.f32.mrb[0].mxu0
    %640 = vdwg.mxu0
    %v641 = vadd.f32 %v568, %v638
    %v642 = vxor.u32 %v641, 2147483648
    %v643 = vmul.f32 %v642, 1.442695
    %v644 = vpow.pop %v643
    %v645 = vadd.f32 %v644, 1.0
    %v646 = vrcp.pop %v645
    %v647 = vmul.f32 1.0, %v646
    %v648 = vtanh.pop %v641
    %v649 = vmul.f32 %v647, %v556
    %651 = vrot.lane.b32.xlu0 %v648, 64
    %v652 = vpop.permute.xlu0 %651
    %v654 = vmul.f32 %v647, %v652
    %656 = vrot.lane.b32.xlu0 %v654, 32
    %v657 = vpop.permute.xlu0 %656
    %v659 = vadd.f32 %v649, %v657
    %v660 = vtanh.pop %v659
    %662 = vrot.lane.b32.xlu0 %v660, 64
    %v663 = vpop.permute.xlu0 %662
    %v665 = vmul.f32 %v647, %v663
    %667 = vrot.lane.b32.xlu0 %v665, 32
    %v668 = vpop.permute.xlu0 %667
    %670 = vst.msk [vmem:[#allocation3 + $0x8] sm:$0x3] %vm257, %v668
    %v671 = vld [vmem:[#allocation2 + $0xa] sm:$0x3]
    %v672 = vsel %vm154, %v668, 0
    %674 = vmatprep.subr.mxu0 0.0
    %675 = vmatpush1.msra.mxu0 %v149
    %676 = vmatprep.subr.mxu0 0.0
    %677 = vmatpush1.msra.mxu0 %v150
    %678 = vmatprep.subr.mxu0 0.0
    %679 = vmatpush1.msra.mxu0 %v151
    %680 = vmatprep.subr.mxu0 0.0
    %681 = vmatpush1.msra.mxu0 %v152
    %682 = vmatprep.subr.mxu0 0.0
    %683 = vmatpush1.msra.mxu0 0.0
    %684 = vmatprep.subr.mxu0 0.0
    %685 = vmatpush1.msra.mxu0 0.0
    %686 = vmatprep.subr.mxu0 0.0
    %687 = vmatpush1.msra.mxu0 0.0
    %688 = vmatprep.subr.mxu0 0.0
    %689 = vmatpush1.msra.mxu0 0.0
    %690 = vmatprep.subr.mxu0 0.0
    %691 = vmatpush1.msra.mxu0 0.0
    %692 = vmatprep.subr.mxu0 0.0
    %693 = vmatpush1.msra.mxu0 0.0
    %694 = vmatprep.subr.mxu0 0.0
    %695 = vmatpush1.msra.mxu0 0.0
    %696 = vmatprep.subr.mxu0 0.0
    %697 = vmatpush1.msra.mxu0 0.0
    %698 = vmatprep.subr.mxu0 0.0
    %699 = vmatpush1.msra.mxu0 0.0
    %700 = vmatprep.subr.mxu0 0.0
    %701 = vmatpush1.msra.mxu0 0.0
    %702 = vmatprep.subr.mxu0 0.0
    %703 = vmatpush1.msra.mxu0 0.0
    %704 = vmatprep.subr.mxu0 0.0
    %705 = vmatpush1.msra.mxu0 0.0
    %706 = vmatprep.subr.mxu0 0.0
    %707 = vmatpush1.msra.mxu0 0.0
    %708 = vmatprep.subr.mxu0 0.0
    %709 = vmatpush1.msra.mxu0 0.0
    %710 = vmatprep.subr.mxu0 0.0
    %711 = vmatpush1.msra.mxu0 0.0
    %712 = vmatprep.subr.mxu0 0.0
    %713 = vmatpush1.msra.mxu0 0.0
    %714 = vmatprep.subr.mxu0 0.0
    %715 = vmatpush1.msra.mxu0 0.0
    %716 = vmatprep.subr.mxu0 0.0
    %717 = vmatpush1.msra.mxu0 0.0
    %718 = vmatprep.subr.mxu0 0.0
    %719 = vmatpush1.msra.mxu0 0.0
    %720 = vmatprep.subr.mxu0 0.0
    %721 = vmatpush1.msra.mxu0 0.0
    %722 = vmatprep.subr.mxu0 0.0
    %723 = vmatpush1.msra.mxu0 0.0
    %724 = vmatprep.subr.mxu0 0.0
    %725 = vmatpush1.msra.mxu0 0.0
    %726 = vmatprep.subr.mxu0 0.0
    %727 = vmatpush1.msra.mxu0 0.0
    %728 = vmatprep.subr.mxu0 0.0
    %729 = vmatpush1.msra.mxu0 0.0
    %730 = vmatprep.subr.mxu0 0.0
    %731 = vmatpush1.msra.mxu0 0.0
    %732 = vmatprep.subr.mxu0 0.0
    %733 = vmatpush1.msra.mxu0 0.0
    %734 = vmatprep.subr.mxu0 0.0
    %735 = vmatpush1.msra.mxu0 0.0
    %736 = vmatprep.subr.mxu0 0.0
    %737 = vmatpush1.msra.mxu0 0.0
    %738 = vmatprep.mubr.f32.mxu0 0.0
    %739 = vmatmul.mubr.f32.gmra.mrb[0].mxu0 %v672
    %v740 = vpop.f32.mrb[0].mxu0
    %v741 = vadd.f32 0.0, %v740
    %v742 = vpop.f32.mrb[0].mxu0
    %743 = vdwg.mxu0
    %v744 = vadd.f32 %v671, %v741
    %v745 = vxor.u32 %v744, 2147483648
    %v746 = vmul.f32 %v745, 1.442695
    %v747 = vpow.pop %v746
    %v748 = vadd.f32 %v747, 1.0
    %v749 = vrcp.pop %v748
    %v750 = vmul.f32 1.0, %v749
    %v751 = vtanh.pop %v744
    %v752 = vmul.f32 %v750, %v659
    %754 = vrot.lane.b32.xlu0 %v751, 64
    %v755 = vpop.permute.xlu0 %754
    %v757 = vmul.f32 %v750, %v755
    %759 = vrot.lane.b32.xlu0 %v757, 32
    %v760 = vpop.permute.xlu0 %759
    %v762 = vadd.f32 %v752, %v760
    %v763 = vtanh.pop %v762
    %765 = vrot.lane.b32.xlu0 %v763, 64
    %v766 = vpop.permute.xlu0 %765
    %v768 = vmul.f32 %v750, %v766
    %770 = vrot.lane.b32.xlu0 %v768, 32
    %v771 = vpop.permute.xlu0 %770
    %773 = vst.msk [vmem:[#allocation3 + $0xa] sm:$0x3] %vm257, %v771
    %v774 = vld [vmem:[#allocation2 + $0xc] sm:$0x3]
    %v775 = vsel %vm154, %v771, 0
    %777 = vmatprep.subr.mxu0 0.0
    %778 = vmatpush1.msra.mxu0 %v149
    %779 = vmatprep.subr.mxu0 0.0
    %780 = vmatpush1.msra.mxu0 %v150
    %781 = vmatprep.subr.mxu0 0.0
    %782 = vmatpush1.msra.mxu0 %v151
    %783 = vmatprep.subr.mxu0 0.0
    %784 = vmatpush1.msra.mxu0 %v152
    %785 = vmatprep.subr.mxu0 0.0
    %786 = vmatpush1.msra.mxu0 0.0
    %787 = vmatprep.subr.mxu0 0.0
    %788 = vmatpush1.msra.mxu0 0.0
    %789 = vmatprep.subr.mxu0 0.0
    %790 = vmatpush1.msra.mxu0 0.0
    %791 = vmatprep.subr.mxu0 0.0
    %792 = vmatpush1.msra.mxu0 0.0
    %793 = vmatprep.subr.mxu0 0.0
    %794 = vmatpush1.msra.mxu0 0.0
    %795 = vmatprep.subr.mxu0 0.0
    %796 = vmatpush1.msra.mxu0 0.0
    %797 = vmatprep.subr.mxu0 0.0
    %798 = vmatpush1.msra.mxu0 0.0
    %799 = vmatprep.subr.mxu0 0.0
    %800 = vmatpush1.msra.mxu0 0.0
    %801 = vmatprep.subr.mxu0 0.0
    %802 = vmatpush1.msra.mxu0 0.0
    %803 = vmatprep.subr.mxu0 0.0
    %804 = vmatpush1.msra.mxu0 0.0
    %805 = vmatprep.subr.mxu0 0.0
    %806 = vmatpush1.msra.mxu0 0.0
    %807 = vmatprep.subr.mxu0 0.0
    %808 = vmatpush1.msra.mxu0 0.0
    %809 = vmatprep.subr.mxu0 0.0
    %810 = vmatpush1.msra.mxu0 0.0
    %811 = vmatprep.subr.mxu0 0.0
    %812 = vmatpush1.msra.mxu0 0.0
    %813 = vmatprep.subr.mxu0 0.0
    %814 = vmatpush1.msra.mxu0 0.0
    %815 = vmatprep.subr.mxu0 0.0
    %816 = vmatpush1.msra.mxu0 0.0
    %817 = vmatprep.subr.mxu0 0.0
    %818 = vmatpush1.msra.mxu0 0.0
    %819 = vmatprep.subr.mxu0 0.0
    %820 = vmatpush1.msra.mxu0 0.0
    %821 = vmatprep.subr.mxu0 0.0
    %822 = vmatpush1.msra.mxu0 0.0
    %823 = vmatprep.subr.mxu0 0.0
    %824 = vmatpush1.msra.mxu0 0.0
    %825 = vmatprep.subr.mxu0 0.0
    %826 = vmatpush1.msra.mxu0 0.0
    %827 = vmatprep.subr.mxu0 0.0
    %828 = vmatpush1.msra.mxu0 0.0
    %829 = vmatprep.subr.mxu0 0.0
    %830 = vmatpush1.msra.mxu0 0.0
    %831 = vmatprep.subr.mxu0 0.0
    %832 = vmatpush1.msra.mxu0 0.0
    %833 = vmatprep.subr.mxu0 0.0
    %834 = vmatpush1.msra.mxu0 0.0
    %835 = vmatprep.subr.mxu0 0.0
    %836 = vmatpush1.msra.mxu0 0.0
    %837 = vmatprep.subr.mxu0 0.0
    %838 = vmatpush1.msra.mxu0 0.0
    %839 = vmatprep.subr.mxu0 0.0
    %840 = vmatpush1.msra.mxu0 0.0
    %841 = vmatprep.mubr.f32.mxu0 0.0
    %842 = vmatmul.mubr.f32.gmra.mrb[0].mxu0 %v775
    %v843 = vpop.f32.mrb[0].mxu0
    %v844 = vadd.f32 0.0, %v843
    %v845 = vpop.f32.mrb[0].mxu0
    %846 = vdwg.mxu0
    %v847 = vadd.f32 %v774, %v844
    %v848 = vxor.u32 %v847, 2147483648
    %v849 = vmul.f32 %v848, 1.442695
    %v850 = vpow.pop %v849
    %v851 = vadd.f32 %v850, 1.0
    %v852 = vrcp.pop %v851
    %v853 = vmul.f32 1.0, %v852
    %v854 = vtanh.pop %v847
    %v855 = vmul.f32 %v853, %v762
    %857 = vrot.lane.b32.xlu0 %v854, 64
    %v858 = vpop.permute.xlu0 %857
    %v860 = vmul.f32 %v853, %v858
    %862 = vrot.lane.b32.xlu0 %v860, 32
    %v863 = vpop.permute.xlu0 %862
    %v865 = vadd.f32 %v855, %v863
    %v866 = vtanh.pop %v865
    %868 = vrot.lane.b32.xlu0 %v866, 64
    %v869 = vpop.permute.xlu0 %868
    %v871 = vmul.f32 %v853, %v869
    %873 = vrot.lane.b32.xlu0 %v871, 32
    %v874 = vpop.permute.xlu0 %873
    %876 = vst.msk [vmem:[#allocation3 + $0xc] sm:$0x3] %vm257, %v874
    %v877 = vld [vmem:[#allocation2 + $0xe] sm:$0x3]
    %v878 = vsel %vm154, %v874, 0
    %880 = vmatprep.subr.mxu0 0.0
    %881 = vmatpush1.msra.mxu0 %v149
    %882 = vmatprep.subr.mxu0 0.0
    %883 = vmatpush1.msra.mxu0 %v150
    %884 = vmatprep.subr.mxu0 0.0
    %885 = vmatpush1.msra.mxu0 %v151
    %886 = vmatprep.subr.mxu0 0.0
    %887 = vmatpush1.msra.mxu0 %v152
    %888 = vmatprep.subr.mxu0 0.0
    %889 = vmatpush1.msra.mxu0 0.0
    %890 = vmatprep.subr.mxu0 0.0
    %891 = vmatpush1.msra.mxu0 0.0
    %892 = vmatprep.subr.mxu0 0.0
    %893 = vmatpush1.msra.mxu0 0.0
    %894 = vmatprep.subr.mxu0 0.0
    %895 = vmatpush1.msra.mxu0 0.0
    %896 = vmatprep.subr.mxu0 0.0
    %897 = vmatpush1.msra.mxu0 0.0
    %898 = vmatprep.subr.mxu0 0.0
    %899 = vmatpush1.msra.mxu0 0.0
    %900 = vmatprep.subr.mxu0 0.0
    %901 = vmatpush1.msra.mxu0 0.0
    %902 = vmatprep.subr.mxu0 0.0
    %903 = vmatpush1.msra.mxu0 0.0
    %904 = vmatprep.subr.mxu0 0.0
    %905 = vmatpush1.msra.mxu0 0.0
    %906 = vmatprep.subr.mxu0 0.0
    %907 = vmatpush1.msra.mxu0 0.0
    %908 = vmatprep.subr.mxu0 0.0
    %909 = vmatpush1.msra.mxu0 0.0
    %910 = vmatprep.subr.mxu0 0.0
    %911 = vmatpush1.msra.mxu0 0.0
    %912 = vmatprep.subr.mxu0 0.0
    %913 = vmatpush1.msra.mxu0 0.0
    %914 = vmatprep.subr.mxu0 0.0
    %915 = vmatpush1.msra.mxu0 0.0
    %916 = vmatprep.subr.mxu0 0.0
    %917 = vmatpush1.msra.mxu0 0.0
    %918 = vmatprep.subr.mxu0 0.0
    %919 = vmatpush1.msra.mxu0 0.0
    %920 = vmatprep.subr.mxu0 0.0
    %921 = vmatpush1.msra.mxu0 0.0
    %922 = vmatprep.subr.mxu0 0.0
    %923 = vmatpush1.msra.mxu0 0.0
    %924 = vmatprep.subr.mxu0 0.0
    %925 = vmatpush1.msra.mxu0 0.0
    %926 = vmatprep.subr.mxu0 0.0
    %927 = vmatpush1.msra.mxu0 0.0
    %928 = vmatprep.subr.mxu0 0.0
    %929 = vmatpush1.msra.mxu0 0.0
    %930 = vmatprep.subr.mxu0 0.0
    %931 = vmatpush1.msra.mxu0 0.0
    %932 = vmatprep.subr.mxu0 0.0
    %933 = vmatpush1.msra.mxu0 0.0
    %934 = vmatprep.subr.mxu0 0.0
    %935 = vmatpush1.msra.mxu0 0.0
    %936 = vmatprep.subr.mxu0 0.0
    %937 = vmatpush1.msra.mxu0 0.0
    %938 = vmatprep.subr.mxu0 0.0
    %939 = vmatpush1.msra.mxu0 0.0
    %940 = vmatprep.subr.mxu0 0.0
    %941 = vmatpush1.msra.mxu0 0.0
    %942 = vmatprep.subr.mxu0 0.0
    %943 = vmatpush1.msra.mxu0 0.0
    %944 = vmatprep.mubr.f32.mxu0 0.0
    %945 = vmatmul.mubr.f32.gmra.mrb[0].mxu0 %v878
    %v946 = vpop.f32.mrb[0].mxu0
    %v947 = vadd.f32 0.0, %v946
    %v948 = vpop.f32.mrb[0].mxu0
    %949 = vdwg.mxu0
    %v950 = vadd.f32 %v877, %v947
    %v951 = vxor.u32 %v950, 2147483648
    %v952 = vmul.f32 %v951, 1.442695
    %v953 = vpow.pop %v952
    %v954 = vadd.f32 %v953, 1.0
    %v955 = vrcp.pop %v954
    %v956 = vmul.f32 1.0, %v955
    %v957 = vtanh.pop %v950
    %v958 = vmul.f32 %v956, %v865
    %960 = vrot.lane.b32.xlu0 %v957, 64
    %v961 = vpop.permute.xlu0 %960
    %v963 = vmul.f32 %v956, %v961
    %965 = vrot.lane.b32.xlu0 %v963, 32
    %v966 = vpop.permute.xlu0 %965
    %v968 = vadd.f32 %v958, %v966
    %v969 = vtanh.pop %v968
    %971 = vrot.lane.b32.xlu0 %v969, 64
    %v972 = vpop.permute.xlu0 %971
    %v974 = vmul.f32 %v956, %v972
    %976 = vrot.lane.b32.xlu0 %v974, 32
    %v977 = vpop.permute.xlu0 %976
    %979 = vst.msk [vmem:[#allocation3 + $0xe] sm:$0x3] %vm257, %v977
    %v980 = vld [vmem:[#allocation3] sm:$0xff]
    %v981 = vld [vmem:[#allocation3 + $0x8] sm:$0xff]
    %v982 = vld [vmem:[#allocation7] sm:$0xff]
    %v983 = vld [vmem:[#allocation7 + $0x8] sm:$0xff]
    %v984 = vld [vmem:[#allocation7 + $0x10] sm:$0xff]
    %v985 = vld [vmem:[#allocation7 + $0x18] sm:$0xff]
    %v986 = vld [vmem:[%s4 + $0x1] sm:$0x1]
    %v987 = vlaneseq
    %v988 = vshrl.u32 %v987, 7
    %v989 = vsub.s32 0, %v988
    %v990 = vrot.slane %v986, %v989
    %v992 = vsel %vm154, %v980, 0
    %v995 = vsel %vm154, %v981, 0
    %997 = vmatprep.subr.mxu0 0.0
    %998 = vmatpush1.msra.mxu0 %v982
    %999 = vmatprep.subr.mxu0 0.0
    %1000 = vmatpush1.msra.mxu0 %v983
    %1001 = vmatprep.subr.mxu0 0.0
    %1002 = vmatpush1.msra.mxu0 %v984
    %1003 = vmatprep.subr.mxu0 0.0
    %1004 = vmatpush1.msra.mxu0 %v985
    %1005 = vmatprep.subr.mxu0 0.0
    %1006 = vmatpush1.msra.mxu0 0.0
    %1007 = vmatprep.subr.mxu0 0.0
    %1008 = vmatpush1.msra.mxu0 0.0
    %1009 = vmatprep.subr.mxu0 0.0
    %1010 = vmatpush1.msra.mxu0 0.0
    %1011 = vmatprep.subr.mxu0 0.0
    %1012 = vmatpush1.msra.mxu0 0.0
    %1013 = vmatprep.subr.mxu0 0.0
    %1014 = vmatpush1.msra.mxu0 0.0
    %1015 = vmatprep.subr.mxu0 0.0
    %1016 = vmatpush1.msra.mxu0 0.0
    %1017 = vmatprep.subr.mxu0 0.0
    %1018 = vmatpush1.msra.mxu0 0.0
    %1019 = vmatprep.subr.mxu0 0.0
    %1020 = vmatpush1.msra.mxu0 0.0
    %1021 = vmatprep.subr.mxu0 0.0
    %1022 = vmatpush1.msra.mxu0 0.0
    %1023 = vmatprep.subr.mxu0 0.0
    %1024 = vmatpush1.msra.mxu0 0.0
    %1025 = vmatprep.subr.mxu0 0.0
    %1026 = vmatpush1.msra.mxu0 0.0
    %1027 = vmatprep.subr.mxu0 0.0
    %1028 = vmatpush1.msra.mxu0 0.0
    %1029 = vmatprep.subr.mxu0 0.0
    %1030 = vmatpush1.msra.mxu0 0.0
    %1031 = vmatprep.subr.mxu0 0.0
    %1032 = vmatpush1.msra.mxu0 0.0
    %1033 = vmatprep.subr.mxu0 0.0
    %1034 = vmatpush1.msra.mxu0 0.0
    %1035 = vmatprep.subr.mxu0 0.0
    %1036 = vmatpush1.msra.mxu0 0.0
    %1037 = vmatprep.subr.mxu0 0.0
    %1038 = vmatpush1.msra.mxu0 0.0
    %1039 = vmatprep.subr.mxu0 0.0
    %1040 = vmatpush1.msra.mxu0 0.0
    %1041 = vmatprep.subr.mxu0 0.0
    %1042 = vmatpush1.msra.mxu0 0.0
    %1043 = vmatprep.subr.mxu0 0.0
    %1044 = vmatpush1.msra.mxu0 0.0
    %1045 = vmatprep.subr.mxu0 0.0
    %1046 = vmatpush1.msra.mxu0 0.0
    %1047 = vmatprep.subr.mxu0 0.0
    %1048 = vmatpush1.msra.mxu0 0.0
    %1049 = vmatprep.subr.mxu0 0.0
    %1050 = vmatpush1.msra.mxu0 0.0
    %1051 = vmatprep.subr.mxu0 0.0
    %1052 = vmatpush1.msra.mxu0 0.0
    %1053 = vmatprep.subr.mxu0 0.0
    %1054 = vmatpush1.msra.mxu0 0.0
    %1055 = vmatprep.subr.mxu0 0.0
    %1056 = vmatpush1.msra.mxu0 0.0
    %1057 = vmatprep.subr.mxu0 0.0
    %1058 = vmatpush1.msra.mxu0 0.0
    %1059 = vmatprep.subr.mxu0 0.0
    %1060 = vmatpush1.msra.mxu0 0.0
    %1061 = vmatprep.mubr.f32.mxu0 0.0
    %1062 = vmatmul.mubr.f32.gmra.mrb[0].mxu0 %v992
    %v1063 = vpop.f32.mrb[0].mxu0
    %v1064 = vadd.f32 %v990, %v1063
    %v1065 = vpop.f32.mrb[0].mxu0
    %1066 = vmatprep.mubr.f32.mxu0 0.0
    %1067 = vmatmul.mubr.f32.gmra.mrb[0].mxu0 %v995
    %v1068 = vpop.f32.mrb[0].mxu0
    %v1069 = vadd.f32 %v990, %v1068
    %v1070 = vpop.f32.mrb[0].mxu0
    %1071 = vdwg.mxu0
    %1072 = vst [vmem:[#allocation2] sm:$0xff] %v1064
    %1073 = vst [vmem:[#allocation2 + $0x8] sm:$0xff] %v1069
    %s1074 = scalar_lea.vmem %s3, 32
    %v1075 = vld [vmem:[%s1074] sm:$0xff]
    %v1076 = vld [vmem:[%s1074 + $0x8] sm:$0xff]
    %v1077 = vld [vmem:[%s1074 + $0x10] sm:$0xff]
    %v1078 = vld [vmem:[%s1074 + $0x18] sm:$0xff]
    %v1079 = vld [vmem:[#allocation2] sm:$0x3]
    %1080 = vmatprep.subr.mxu0 0.0
    %1081 = vmatpush1.msra.mxu0 %v1075
    %1082 = vmatprep.subr.mxu0 0.0
    %1083 = vmatpush1.msra.mxu0 %v1076
    %1084 = vmatprep.subr.mxu0 0.0
    %1085 = vmatpush1.msra.mxu0 %v1077
    %1086 = vmatprep.subr.mxu0 0.0
    %1087 = vmatpush1.msra.mxu0 %v1078
    %1088 = vmatprep.subr.mxu0 0.0
    %1089 = vmatpush1.msra.mxu0 0.0
    %1090 = vmatprep.subr.mxu0 0.0
    %1091 = vmatpush1.msra.mxu0 0.0
    %1092 = vmatprep.subr.mxu0 0.0
    %1093 = vmatpush1.msra.mxu0 0.0
    %1094 = vmatprep.subr.mxu0 0.0
    %1095 = vmatpush1.msra.mxu0 0.0
    %1096 = vmatprep.subr.mxu0 0.0
    %1097 = vmatpush1.msra.mxu0 0.0
    %1098 = vmatprep.subr.mxu0 0.0
    %1099 = vmatpush1.msra.mxu0 0.0
    %1100 = vmatprep.subr.mxu0 0.0
    %1101 = vmatpush1.msra.mxu0 0.0
    %1102 = vmatprep.subr.mxu0 0.0
    %1103 = vmatpush1.msra.mxu0 0.0
    %1104 = vmatprep.subr.mxu0 0.0
    %1105 = vmatpush1.msra.mxu0 0.0
    %1106 = vmatprep.subr.mxu0 0.0
    %1107 = vmatpush1.msra.mxu0 0.0
    %1108 = vmatprep.subr.mxu0 0.0
    %1109 = vmatpush1.msra.mxu0 0.0
    %1110 = vmatprep.subr.mxu0 0.0
    %1111 = vmatpush1.msra.mxu0 0.0
    %1112 = vmatprep.subr.mxu0 0.0
    %1113 = vmatpush1.msra.mxu0 0.0
    %1114 = vmatprep.subr.mxu0 0.0
    %1115 = vmatpush1.msra.mxu0 0.0
    %1116 = vmatprep.subr.mxu0 0.0
    %1117 = vmatpush1.msra.mxu0 0.0
    %1118 = vmatprep.subr.mxu0 0.0
    %1119 = vmatpush1.msra.mxu0 0.0
    %1120 = vmatprep.subr.mxu0 0.0
    %1121 = vmatpush1.msra.mxu0 0.0
    %1122 = vmatprep.subr.mxu0 0.0
    %1123 = vmatpush1.msra.mxu0 0.0
    %1124 = vmatprep.subr.mxu0 0.0
    %1125 = vmatpush1.msra.mxu0 0.0
    %1126 = vmatprep.subr.mxu0 0.0
    %1127 = vmatpush1.msra.mxu0 0.0
    %1128 = vmatprep.subr.mxu0 0.0
    %1129 = vmatpush1.msra.mxu0 0.0
    %1130 = vmatprep.subr.mxu0 0.0
    %1131 = vmatpush1.msra.mxu0 0.0
    %1132 = vmatprep.subr.mxu0 0.0
    %1133 = vmatpush1.msra.mxu0 0.0
    %1134 = vmatprep.subr.mxu0 0.0
    %1135 = vmatpush1.msra.mxu0 0.0
    %1136 = vmatprep.subr.mxu0 0.0
    %1137 = vmatpush1.msra.mxu0 0.0
    %1138 = vmatprep.subr.mxu0 0.0
    %1139 = vmatpush1.msra.mxu0 0.0
    %1140 = vmatprep.subr.mxu0 0.0
    %1141 = vmatpush1.msra.mxu0 0.0
    %1142 = vmatprep.subr.mxu0 0.0
    %1143 = vmatpush1.msra.mxu0 0.0
    %1144 = vmatprep.mubr.f32.mxu0 0.0
    %1145 = vmatmul.mubr.f32.gmra.mrb[0].mxu0 %v156
    %v1146 = vpop.f32.mrb[0].mxu0
    %v1147 = vadd.f32 0.0, %v1146
    %v1148 = vpop.f32.mrb[0].mxu0
    %1149 = vdwg.mxu0
    %v1150 = vadd.f32 %v1079, %v1147
    %v1151 = vxor.u32 %v1150, 2147483648
    %v1152 = vmul.f32 %v1151, 1.442695
    %v1153 = vpow.pop %v1152
    %v1154 = vadd.f32 %v1153, 1.0
    %v1155 = vrcp.pop %v1154
    %v1156 = vmul.f32 1.0, %v1155
    %v1157 = vtanh.pop %v1150
    %v1158 = vmul.f32 %v1156, 0.0
    %1160 = vrot.lane.b32.xlu0 %v1157, 64
    %v1161 = vpop.permute.xlu0 %1160
    %v1163 = vmul.f32 %v1156, %v1161
    %1165 = vrot.lane.b32.xlu0 %v1163, 32
    %v1166 = vpop.permute.xlu0 %1165
    %v1168 = vadd.f32 %v1158, %v1166
    %v1169 = vtanh.pop %v1168
    %1171 = vrot.lane.b32.xlu0 %v1169, 64
    %v1172 = vpop.permute.xlu0 %1171
    %v1174 = vmul.f32 %v1156, %v1172
    %v1175 = vld [vmem:[#allocation2 + $0x2] sm:$0x3]
    %1177 = vrot.lane.b32.xlu0 %v1174, 32
    %v1178 = vpop.permute.xlu0 %1177
    %v1179 = vsel %vm154, %v1178, 0
    %1181 = vmatprep.subr.mxu0 0.0
    %1182 = vmatpush1.msra.mxu0 %v1075
    %1183 = vmatprep.subr.mxu0 0.0
    %1184 = vmatpush1.msra.mxu0 %v1076
    %1185 = vmatprep.subr.mxu0 0.0
    %1186 = vmatpush1.msra.mxu0 %v1077
    %1187 = vmatprep.subr.mxu0 0.0
    %1188 = vmatpush1.msra.mxu0 %v1078
    %1189 = vmatprep.subr.mxu0 0.0
    %1190 = vmatpush1.msra.mxu0 0.0
    %1191 = vmatprep.subr.mxu0 0.0
    %1192 = vmatpush1.msra.mxu0 0.0
    %1193 = vmatprep.subr.mxu0 0.0
    %1194 = vmatpush1.msra.mxu0 0.0
    %1195 = vmatprep.subr.mxu0 0.0
    %1196 = vmatpush1.msra.mxu0 0.0
    %1197 = vmatprep.subr.mxu0 0.0
    %1198 = vmatpush1.msra.mxu0 0.0
    %1199 = vmatprep.subr.mxu0 0.0
    %1200 = vmatpush1.msra.mxu0 0.0
    %1201 = vmatprep.subr.mxu0 0.0
    %1202 = vmatpush1.msra.mxu0 0.0
    %1203 = vmatprep.subr.mxu0 0.0
    %1204 = vmatpush1.msra.mxu0 0.0
    %1205 = vmatprep.subr.mxu0 0.0
    %1206 = vmatpush1.msra.mxu0 0.0
    %1207 = vmatprep.subr.mxu0 0.0
    %1208 = vmatpush1.msra.mxu0 0.0
    %1209 = vmatprep.subr.mxu0 0.0
    %1210 = vmatpush1.msra.mxu0 0.0
    %1211 = vmatprep.subr.mxu0 0.0
    %1212 = vmatpush1.msra.mxu0 0.0
    %1213 = vmatprep.subr.mxu0 0.0
    %1214 = vmatpush1.msra.mxu0 0.0
    %1215 = vmatprep.subr.mxu0 0.0
    %1216 = vmatpush1.msra.mxu0 0.0
    %1217 = vmatprep.subr.mxu0 0.0
    %1218 = vmatpush1.msra.mxu0 0.0
    %1219 = vmatprep.subr.mxu0 0.0
    %1220 = vmatpush1.msra.mxu0 0.0
    %1221 = vmatprep.subr.mxu0 0.0
    %1222 = vmatpush1.msra.mxu0 0.0
    %1223 = vmatprep.subr.mxu0 0.0
    %1224 = vmatpush1.msra.mxu0 0.0
    %1225 = vmatprep.subr.mxu0 0.0
    %1226 = vmatpush1.msra.mxu0 0.0
    %1227 = vmatprep.subr.mxu0 0.0
    %1228 = vmatpush1.msra.mxu0 0.0
    %1229 = vmatprep.subr.mxu0 0.0
    %1230 = vmatpush1.msra.mxu0 0.0
    %1231 = vmatprep.subr.mxu0 0.0
    %1232 = vmatpush1.msra.mxu0 0.0
    %1233 = vmatprep.subr.mxu0 0.0
    %1234 = vmatpush1.msra.mxu0 0.0
    %1235 = vmatprep.subr.mxu0 0.0
    %1236 = vmatpush1.msra.mxu0 0.0
    %1237 = vmatprep.subr.mxu0 0.0
    %1238 = vmatpush1.msra.mxu0 0.0
    %1239 = vmatprep.subr.mxu0 0.0
    %1240 = vmatpush1.msra.mxu0 0.0
    %1241 = vmatprep.subr.mxu0 0.0
    %1242 = vmatpush1.msra.mxu0 0.0
    %1243 = vmatprep.subr.mxu0 0.0
    %1244 = vmatpush1.msra.mxu0 0.0
    %1245 = vmatprep.mubr.f32.mxu0 0.0
    %1246 = vmatmul.mubr.f32.gmra.mrb[0].mxu0 %v1179
    %v1247 = vpop.f32.mrb[0].mxu0
    %v1248 = vadd.f32 0.0, %v1247
    %v1249 = vpop.f32.mrb[0].mxu0
    %1250 = vdwg.mxu0
    %v1251 = vadd.f32 %v1175, %v1248
    %v1252 = vxor.u32 %v1251, 2147483648
    %v1253 = vmul.f32 %v1252, 1.442695
    %v1254 = vpow.pop %v1253
    %v1255 = vadd.f32 %v1254, 1.0
    %v1256 = vrcp.pop %v1255
    %v1257 = vmul.f32 1.0, %v1256
    %v1258 = vtanh.pop %v1251
    %v1259 = vmul.f32 %v1257, %v1168
    %1261 = vrot.lane.b32.xlu0 %v1258, 64
    %v1262 = vpop.permute.xlu0 %1261
    %v1264 = vmul.f32 %v1257, %v1262
    %1266 = vrot.lane.b32.xlu0 %v1264, 32
    %v1267 = vpop.permute.xlu0 %1266
    %v1269 = vadd.f32 %v1259, %v1267
    %v1270 = vtanh.pop %v1269
    %1272 = vrot.lane.b32.xlu0 %v1270, 64
    %v1273 = vpop.permute.xlu0 %1272
    %v1275 = vmul.f32 %v1257, %v1273
    %v1276 = vld [vmem:[#allocation2 + $0x4] sm:$0x3]
    %1278 = vrot.lane.b32.xlu0 %v1275, 32
    %v1279 = vpop.permute.xlu0 %1278
    %v1280 = vsel %vm154, %v1279, 0
    %1282 = vmatprep.subr.mxu0 0.0
    %1283 = vmatpush1.msra.mxu0 %v1075
    %1284 = vmatprep.subr.mxu0 0.0
    %1285 = vmatpush1.msra.mxu0 %v1076
    %1286 = vmatprep.subr.mxu0 0.0
    %1287 = vmatpush1.msra.mxu0 %v1077
    %1288 = vmatprep.subr.mxu0 0.0
    %1289 = vmatpush1.msra.mxu0 %v1078
    %1290 = vmatprep.subr.mxu0 0.0
    %1291 = vmatpush1.msra.mxu0 0.0
    %1292 = vmatprep.subr.mxu0 0.0
    %1293 = vmatpush1.msra.mxu0 0.0
    %1294 = vmatprep.subr.mxu0 0.0
    %1295 = vmatpush1.msra.mxu0 0.0
    %1296 = vmatprep.subr.mxu0 0.0
    %1297 = vmatpush1.msra.mxu0 0.0
    %1298 = vmatprep.subr.mxu0 0.0
    %1299 = vmatpush1.msra.mxu0 0.0
    %1300 = vmatprep.subr.mxu0 0.0
    %1301 = vmatpush1.msra.mxu0 0.0
    %1302 = vmatprep.subr.mxu0 0.0
    %1303 = vmatpush1.msra.mxu0 0.0
    %1304 = vmatprep.subr.mxu0 0.0
    %1305 = vmatpush1.msra.mxu0 0.0
    %1306 = vmatprep.subr.mxu0 0.0
    %1307 = vmatpush1.msra.mxu0 0.0
    %1308 = vmatprep.subr.mxu0 0.0
    %1309 = vmatpush1.msra.mxu0 0.0
    %1310 = vmatprep.subr.mxu0 0.0
    %1311 = vmatpush1.msra.mxu0 0.0
    %1312 = vmatprep.subr.mxu0 0.0
    %1313 = vmatpush1.msra.mxu0 0.0
    %1314 = vmatprep.subr.mxu0 0.0
    %1315 = vmatpush1.msra.mxu0 0.0
    %1316 = vmatprep.subr.mxu0 0.0
    %1317 = vmatpush1.msra.mxu0 0.0
    %1318 = vmatprep.subr.mxu0 0.0
    %1319 = vmatpush1.msra.mxu0 0.0
    %1320 = vmatprep.subr.mxu0 0.0
    %1321 = vmatpush1.msra.mxu0 0.0
    %1322 = vmatprep.subr.mxu0 0.0
    %1323 = vmatpush1.msra.mxu0 0.0
    %1324 = vmatprep.subr.mxu0 0.0
    %1325 = vmatpush1.msra.mxu0 0.0
    %1326 = vmatprep.subr.mxu0 0.0
    %1327 = vmatpush1.msra.mxu0 0.0
    %1328 = vmatprep.subr.mxu0 0.0
    %1329 = vmatpush1.msra.mxu0 0.0
    %1330 = vmatprep.subr.mxu0 0.0
    %1331 = vmatpush1.msra.mxu0 0.0
    %1332 = vmatprep.subr.mxu0 0.0
    %1333 = vmatpush1.msra.mxu0 0.0
    %1334 = vmatprep.subr.mxu0 0.0
    %1335 = vmatpush1.msra.mxu0 0.0
    %1336 = vmatprep.subr.mxu0 0.0
    %1337 = vmatpush1.msra.mxu0 0.0
    %1338 = vmatprep.subr.mxu0 0.0
    %1339 = vmatpush1.msra.mxu0 0.0
    %1340 = vmatprep.subr.mxu0 0.0
    %1341 = vmatpush1.msra.mxu0 0.0
    %1342 = vmatprep.subr.mxu0 0.0
    %1343 = vmatpush1.msra.mxu0 0.0
    %1344 = vmatprep.subr.mxu0 0.0
    %1345 = vmatpush1.msra.mxu0 0.0
    %1346 = vmatprep.mubr.f32.mxu0 0.0
    %1347 = vmatmul.mubr.f32.gmra.mrb[0].mxu0 %v1280
    %v1348 = vpop.f32.mrb[0].mxu0
    %v1349 = vadd.f32 0.0, %v1348
    %v1350 = vpop.f32.mrb[0].mxu0
    %1351 = vdwg.mxu0
    %v1352 = vadd.f32 %v1276, %v1349
    %v1353 = vxor.u32 %v1352, 2147483648
    %v1354 = vmul.f32 %v1353, 1.442695
    %v1355 = vpow.pop %v1354
    %v1356 = vadd.f32 %v1355, 1.0
    %v1357 = vrcp.pop %v1356
    %v1358 = vmul.f32 1.0, %v1357
    %v1359 = vtanh.pop %v1352
    %v1360 = vmul.f32 %v1358, %v1269
    %1362 = vrot.lane.b32.xlu0 %v1359, 64
    %v1363 = vpop.permute.xlu0 %1362
    %v1365 = vmul.f32 %v1358, %v1363
    %1367 = vrot.lane.b32.xlu0 %v1365, 32
    %v1368 = vpop.permute.xlu0 %1367
    %v1370 = vadd.f32 %v1360, %v1368
    %v1371 = vtanh.pop %v1370
    %1373 = vrot.lane.b32.xlu0 %v1371, 64
    %v1374 = vpop.permute.xlu0 %1373
    %v1376 = vmul.f32 %v1358, %v1374
    %v1377 = vld [vmem:[#allocation2 + $0x6] sm:$0x3]
    %1379 = vrot.lane.b32.xlu0 %v1376, 32
    %v1380 = vpop.permute.xlu0 %1379
    %v1381 = vsel %vm154, %v1380, 0
    %1383 = vmatprep.subr.mxu0 0.0
    %1384 = vmatpush1.msra.mxu0 %v1075
    %1385 = vmatprep.subr.mxu0 0.0
    %1386 = vmatpush1.msra.mxu0 %v1076
    %1387 = vmatprep.subr.mxu0 0.0
    %1388 = vmatpush1.msra.mxu0 %v1077
    %1389 = vmatprep.subr.mxu0 0.0
    %1390 = vmatpush1.msra.mxu0 %v1078
    %1391 = vmatprep.subr.mxu0 0.0
    %1392 = vmatpush1.msra.mxu0 0.0
    %1393 = vmatprep.subr.mxu0 0.0
    %1394 = vmatpush1.msra.mxu0 0.0
    %1395 = vmatprep.subr.mxu0 0.0
    %1396 = vmatpush1.msra.mxu0 0.0
    %1397 = vmatprep.subr.mxu0 0.0
    %1398 = vmatpush1.msra.mxu0 0.0
    %1399 = vmatprep.subr.mxu0 0.0
    %1400 = vmatpush1.msra.mxu0 0.0
    %1401 = vmatprep.subr.mxu0 0.0
    %1402 = vmatpush1.msra.mxu0 0.0
    %1403 = vmatprep.subr.mxu0 0.0
    %1404 = vmatpush1.msra.mxu0 0.0
    %1405 = vmatprep.subr.mxu0 0.0
    %1406 = vmatpush1.msra.mxu0 0.0
    %1407 = vmatprep.subr.mxu0 0.0
    %1408 = vmatpush1.msra.mxu0 0.0
    %1409 = vmatprep.subr.mxu0 0.0
    %1410 = vmatpush1.msra.mxu0 0.0
    %1411 = vmatprep.subr.mxu0 0.0
    %1412 = vmatpush1.msra.mxu0 0.0
    %1413 = vmatprep.subr.mxu0 0.0
    %1414 = vmatpush1.msra.mxu0 0.0
    %1415 = vmatprep.subr.mxu0 0.0
    %1416 = vmatpush1.msra.mxu0 0.0
    %1417 = vmatprep.subr.mxu0 0.0
    %1418 = vmatpush1.msra.mxu0 0.0
    %1419 = vmatprep.subr.mxu0 0.0
    %1420 = vmatpush1.msra.mxu0 0.0
    %1421 = vmatprep.subr.mxu0 0.0
    %1422 = vmatpush1.msra.mxu0 0.0
    %1423 = vmatprep.subr.mxu0 0.0
    %1424 = vmatpush1.msra.mxu0 0.0
    %1425 = vmatprep.subr.mxu0 0.0
    %1426 = vmatpush1.msra.mxu0 0.0
    %1427 = vmatprep.subr.mxu0 0.0
    %1428 = vmatpush1.msra.mxu0 0.0
    %1429 = vmatprep.subr.mxu0 0.0
    %1430 = vmatpush1.msra.mxu0 0.0
    %1431 = vmatprep.subr.mxu0 0.0
    %1432 = vmatpush1.msra.mxu0 0.0
    %1433 = vmatprep.subr.mxu0 0.0
    %1434 = vmatpush1.msra.mxu0 0.0
    %1435 = vmatprep.subr.mxu0 0.0
    %1436 = vmatpush1.msra.mxu0 0.0
    %1437 = vmatprep.subr.mxu0 0.0
    %1438 = vmatpush1.msra.mxu0 0.0
    %1439 = vmatprep.subr.mxu0 0.0
    %1440 = vmatpush1.msra.mxu0 0.0
    %1441 = vmatprep.subr.mxu0 0.0
    %1442 = vmatpush1.msra.mxu0 0.0
    %1443 = vmatprep.subr.mxu0 0.0
    %1444 = vmatpush1.msra.mxu0 0.0
    %1445 = vmatprep.subr.mxu0 0.0
    %1446 = vmatpush1.msra.mxu0 0.0
    %1447 = vmatprep.mubr.f32.mxu0 0.0
    %1448 = vmatmul.mubr.f32.gmra.mrb[0].mxu0 %v1381
    %v1449 = vpop.f32.mrb[0].mxu0
    %v1450 = vadd.f32 0.0, %v1449
    %v1451 = vpop.f32.mrb[0].mxu0
    %1452 = vdwg.mxu0
    %v1453 = vadd.f32 %v1377, %v1450
    %v1454 = vxor.u32 %v1453, 2147483648
    %v1455 = vmul.f32 %v1454, 1.442695
    %v1456 = vpow.pop %v1455
    %v1457 = vadd.f32 %v1456, 1.0
    %v1458 = vrcp.pop %v1457
    %v1459 = vmul.f32 1.0, %v1458
    %v1460 = vtanh.pop %v1453
    %v1461 = vmul.f32 %v1459, %v1370
    %1463 = vrot.lane.b32.xlu0 %v1460, 64
    %v1464 = vpop.permute.xlu0 %1463
    %v1466 = vmul.f32 %v1459, %v1464
    %1468 = vrot.lane.b32.xlu0 %v1466, 32
    %v1469 = vpop.permute.xlu0 %1468
    %v1471 = vadd.f32 %v1461, %v1469
    %v1472 = vtanh.pop %v1471
    %1474 = vrot.lane.b32.xlu0 %v1472, 64
    %v1475 = vpop.permute.xlu0 %1474
    %v1477 = vmul.f32 %v1459, %v1475
    %v1478 = vld [vmem:[#allocation2 + $0x8] sm:$0x3]
    %1480 = vrot.lane.b32.xlu0 %v1477, 32
    %v1481 = vpop.permute.xlu0 %1480
    %v1482 = vsel %vm154, %v1481, 0
    %1484 = vmatprep.subr.mxu0 0.0
    %1485 = vmatpush1.msra.mxu0 %v1075
    %1486 = vmatprep.subr.mxu0 0.0
    %1487 = vmatpush1.msra.mxu0 %v1076
    %1488 = vmatprep.subr.mxu0 0.0
    %1489 = vmatpush1.msra.mxu0 %v1077
    %1490 = vmatprep.subr.mxu0 0.0
    %1491 = vmatpush1.msra.mxu0 %v1078
    %1492 = vmatprep.subr.mxu0 0.0
    %1493 = vmatpush1.msra.mxu0 0.0
    %1494 = vmatprep.subr.mxu0 0.0
    %1495 = vmatpush1.msra.mxu0 0.0
    %1496 = vmatprep.subr.mxu0 0.0
    %1497 = vmatpush1.msra.mxu0 0.0
    %1498 = vmatprep.subr.mxu0 0.0
    %1499 = vmatpush1.msra.mxu0 0.0
    %1500 = vmatprep.subr.mxu0 0.0
    %1501 = vmatpush1.msra.mxu0 0.0
    %1502 = vmatprep.subr.mxu0 0.0
    %1503 = vmatpush1.msra.mxu0 0.0
    %1504 = vmatprep.subr.mxu0 0.0
    %1505 = vmatpush1.msra.mxu0 0.0
    %1506 = vmatprep.subr.mxu0 0.0
    %1507 = vmatpush1.msra.mxu0 0.0
    %1508 = vmatprep.subr.mxu0 0.0
    %1509 = vmatpush1.msra.mxu0 0.0
    %1510 = vmatprep.subr.mxu0 0.0
    %1511 = vmatpush1.msra.mxu0 0.0
    %1512 = vmatprep.subr.mxu0 0.0
    %1513 = vmatpush1.msra.mxu0 0.0
    %1514 = vmatprep.subr.mxu0 0.0
    %1515 = vmatpush1.msra.mxu0 0.0
    %1516 = vmatprep.subr.mxu0 0.0
    %1517 = vmatpush1.msra.mxu0 0.0
    %1518 = vmatprep.subr.mxu0 0.0
    %1519 = vmatpush1.msra.mxu0 0.0
    %1520 = vmatprep.subr.mxu0 0.0
    %1521 = vmatpush1.msra.mxu0 0.0
    %1522 = vmatprep.subr.mxu0 0.0
    %1523 = vmatpush1.msra.mxu0 0.0
    %1524 = vmatprep.subr.mxu0 0.0
    %1525 = vmatpush1.msra.mxu0 0.0
    %1526 = vmatprep.subr.mxu0 0.0
    %1527 = vmatpush1.msra.mxu0 0.0
    %1528 = vmatprep.subr.mxu0 0.0
    %1529 = vmatpush1.msra.mxu0 0.0
    %1530 = vmatprep.subr.mxu0 0.0
    %1531 = vmatpush1.msra.mxu0 0.0
    %1532 = vmatprep.subr.mxu0 0.0
    %1533 = vmatpush1.msra.mxu0 0.0
    %1534 = vmatprep.subr.mxu0 0.0
    %1535 = vmatpush1.msra.mxu0 0.0
    %1536 = vmatprep.subr.mxu0 0.0
    %1537 = vmatpush1.msra.mxu0 0.0
    %1538 = vmatprep.subr.mxu0 0.0
    %1539 = vmatpush1.msra.mxu0 0.0
    %1540 = vmatprep.subr.mxu0 0.0
    %1541 = vmatpush1.msra.mxu0 0.0
    %1542 = vmatprep.subr.mxu0 0.0
    %1543 = vmatpush1.msra.mxu0 0.0
    %1544 = vmatprep.subr.mxu0 0.0
    %1545 = vmatpush1.msra.mxu0 0.0
    %1546 = vmatprep.subr.mxu0 0.0
    %1547 = vmatpush1.msra.mxu0 0.0
    %1548 = vmatprep.mubr.f32.mxu0 0.0
    %1549 = vmatmul.mubr.f32.gmra.mrb[0].mxu0 %v1482
    %v1550 = vpop.f32.mrb[0].mxu0
    %v1551 = vadd.f32 0.0, %v1550
    %v1552 = vpop.f32.mrb[0].mxu0
    %1553 = vdwg.mxu0
    %v1554 = vadd.f32 %v1478, %v1551
    %v1555 = vxor.u32 %v1554, 2147483648
    %v1556 = vmul.f32 %v1555, 1.442695
    %v1557 = vpow.pop %v1556
    %v1558 = vadd.f32 %v1557, 1.0
    %v1559 = vrcp.pop %v1558
    %v1560 = vmul.f32 1.0, %v1559
    %v1561 = vtanh.pop %v1554
    %v1562 = vmul.f32 %v1560, %v1471
    %1564 = vrot.lane.b32.xlu0 %v1561, 64
    %v1565 = vpop.permute.xlu0 %1564
    %v1567 = vmul.f32 %v1560, %v1565
    %1569 = vrot.lane.b32.xlu0 %v1567, 32
    %v1570 = vpop.permute.xlu0 %1569
    %v1572 = vadd.f32 %v1562, %v1570
    %v1573 = vtanh.pop %v1572
    %1575 = vrot.lane.b32.xlu0 %v1573, 64
    %v1576 = vpop.permute.xlu0 %1575
    %v1578 = vmul.f32 %v1560, %v1576
    %v1579 = vld [vmem:[#allocation2 + $0xa] sm:$0x3]
    %1581 = vrot.lane.b32.xlu0 %v1578, 32
    %v1582 = vpop.permute.xlu0 %1581
    %v1583 = vsel %vm154, %v1582, 0
    %1585 = vmatprep.subr.mxu0 0.0
    %1586 = vmatpush1.msra.mxu0 %v1075
    %1587 = vmatprep.subr.mxu0 0.0
    %1588 = vmatpush1.msra.mxu0 %v1076
    %1589 = vmatprep.subr.mxu0 0.0
    %1590 = vmatpush1.msra.mxu0 %v1077
    %1591 = vmatprep.subr.mxu0 0.0
    %1592 = vmatpush1.msra.mxu0 %v1078
    %1593 = vmatprep.subr.mxu0 0.0
    %1594 = vmatpush1.msra.mxu0 0.0
    %1595 = vmatprep.subr.mxu0 0.0
    %1596 = vmatpush1.msra.mxu0 0.0
    %1597 = vmatprep.subr.mxu0 0.0
    %1598 = vmatpush1.msra.mxu0 0.0
    %1599 = vmatprep.subr.mxu0 0.0
    %1600 = vmatpush1.msra.mxu0 0.0
    %1601 = vmatprep.subr.mxu0 0.0
    %1602 = vmatpush1.msra.mxu0 0.0
    %1603 = vmatprep.subr.mxu0 0.0
    %1604 = vmatpush1.msra.mxu0 0.0
    %1605 = vmatprep.subr.mxu0 0.0
    %1606 = vmatpush1.msra.mxu0 0.0
    %1607 = vmatprep.subr.mxu0 0.0
    %1608 = vmatpush1.msra.mxu0 0.0
    %1609 = vmatprep.subr.mxu0 0.0
    %1610 = vmatpush1.msra.mxu0 0.0
    %1611 = vmatprep.subr.mxu0 0.0
    %1612 = vmatpush1.msra.mxu0 0.0
    %1613 = vmatprep.subr.mxu0 0.0
    %1614 = vmatpush1.msra.mxu0 0.0
    %1615 = vmatprep.subr.mxu0 0.0
    %1616 = vmatpush1.msra.mxu0 0.0
    %1617 = vmatprep.subr.mxu0 0.0
    %1618 = vmatpush1.msra.mxu0 0.0
    %1619 = vmatprep.subr.mxu0 0.0
    %1620 = vmatpush1.msra.mxu0 0.0
    %1621 = vmatprep.subr.mxu0 0.0
    %1622 = vmatpush1.msra.mxu0 0.0
    %1623 = vmatprep.subr.mxu0 0.0
    %1624 = vmatpush1.msra.mxu0 0.0
    %1625 = vmatprep.subr.mxu0 0.0
    %1626 = vmatpush1.msra.mxu0 0.0
    %1627 = vmatprep.subr.mxu0 0.0
    %1628 = vmatpush1.msra.mxu0 0.0
    %1629 = vmatprep.subr.mxu0 0.0
    %1630 = vmatpush1.msra.mxu0 0.0
    %1631 = vmatprep.subr.mxu0 0.0
    %1632 = vmatpush1.msra.mxu0 0.0
    %1633 = vmatprep.subr.mxu0 0.0
    %1634 = vmatpush1.msra.mxu0 0.0
    %1635 = vmatprep.subr.mxu0 0.0
    %1636 = vmatpush1.msra.mxu0 0.0
    %1637 = vmatprep.subr.mxu0 0.0
    %1638 = vmatpush1.msra.mxu0 0.0
    %1639 = vmatprep.subr.mxu0 0.0
    %1640 = vmatpush1.msra.mxu0 0.0
    %1641 = vmatprep.subr.mxu0 0.0
    %1642 = vmatpush1.msra.mxu0 0.0
    %1643 = vmatprep.subr.mxu0 0.0
    %1644 = vmatpush1.msra.mxu0 0.0
    %1645 = vmatprep.subr.mxu0 0.0
    %1646 = vmatpush1.msra.mxu0 0.0
    %1647 = vmatprep.subr.mxu0 0.0
    %1648 = vmatpush1.msra.mxu0 0.0
    %1649 = vmatprep.mubr.f32.mxu0 0.0
    %1650 = vmatmul.mubr.f32.gmra.mrb[0].mxu0 %v1583
    %v1651 = vpop.f32.mrb[0].mxu0
    %v1652 = vadd.f32 0.0, %v1651
    %v1653 = vpop.f32.mrb[0].mxu0
    %1654 = vdwg.mxu0
    %v1655 = vadd.f32 %v1579, %v1652
    %v1656 = vxor.u32 %v1655, 2147483648
    %v1657 = vmul.f32 %v1656, 1.442695
    %v1658 = vpow.pop %v1657
    %v1659 = vadd.f32 %v1658, 1.0
    %v1660 = vrcp.pop %v1659
    %v1661 = vmul.f32 1.0, %v1660
    %v1662 = vtanh.pop %v1655
    %v1663 = vmul.f32 %v1661, %v1572
    %1665 = vrot.lane.b32.xlu0 %v1662, 64
    %v1666 = vpop.permute.xlu0 %1665
    %v1668 = vmul.f32 %v1661, %v1666
    %1670 = vrot.lane.b32.xlu0 %v1668, 32
    %v1671 = vpop.permute.xlu0 %1670
    %v1673 = vadd.f32 %v1663, %v1671
    %v1674 = vtanh.pop %v1673
    %1676 = vrot.lane.b32.xlu0 %v1674, 64
    %v1677 = vpop.permute.xlu0 %1676
    %v1679 = vmul.f32 %v1661, %v1677
    %v1680 = vld [vmem:[#allocation2 + $0xc] sm:$0x3]
    %1682 = vrot.lane.b32.xlu0 %v1679, 32
    %v1683 = vpop.permute.xlu0 %1682
    %v1684 = vsel %vm154, %v1683, 0
    %1686 = vmatprep.subr.mxu0 0.0
    %1687 = vmatpush1.msra.mxu0 %v1075
    %1688 = vmatprep.subr.mxu0 0.0
    %1689 = vmatpush1.msra.mxu0 %v1076
    %1690 = vmatprep.subr.mxu0 0.0
    %1691 = vmatpush1.msra.mxu0 %v1077
    %1692 = vmatprep.subr.mxu0 0.0
    %1693 = vmatpush1.msra.mxu0 %v1078
    %1694 = vmatprep.subr.mxu0 0.0
    %1695 = vmatpush1.msra.mxu0 0.0
    %1696 = vmatprep.subr.mxu0 0.0
    %1697 = vmatpush1.msra.mxu0 0.0
    %1698 = vmatprep.subr.mxu0 0.0
    %1699 = vmatpush1.msra.mxu0 0.0
    %1700 = vmatprep.subr.mxu0 0.0
    %1701 = vmatpush1.msra.mxu0 0.0
    %1702 = vmatprep.subr.mxu0 0.0
    %1703 = vmatpush1.msra.mxu0 0.0
    %1704 = vmatprep.subr.mxu0 0.0
    %1705 = vmatpush1.msra.mxu0 0.0
    %1706 = vmatprep.subr.mxu0 0.0
    %1707 = vmatpush1.msra.mxu0 0.0
    %1708 = vmatprep.subr.mxu0 0.0
    %1709 = vmatpush1.msra.mxu0 0.0
    %1710 = vmatprep.subr.mxu0 0.0
    %1711 = vmatpush1.msra.mxu0 0.0
    %1712 = vmatprep.subr.mxu0 0.0
    %1713 = vmatpush1.msra.mxu0 0.0
    %1714 = vmatprep.subr.mxu0 0.0
    %1715 = vmatpush1.msra.mxu0 0.0
    %1716 = vmatprep.subr.mxu0 0.0
    %1717 = vmatpush1.msra.mxu0 0.0
    %1718 = vmatprep.subr.mxu0 0.0
    %1719 = vmatpush1.msra.mxu0 0.0
    %1720 = vmatprep.subr.mxu0 0.0
    %1721 = vmatpush1.msra.mxu0 0.0
    %1722 = vmatprep.subr.mxu0 0.0
    %1723 = vmatpush1.msra.mxu0 0.0
    %1724 = vmatprep.subr.mxu0 0.0
    %1725 = vmatpush1.msra.mxu0 0.0
    %1726 = vmatprep.subr.mxu0 0.0
    %1727 = vmatpush1.msra.mxu0 0.0
    %1728 = vmatprep.subr.mxu0 0.0
    %1729 = vmatpush1.msra.mxu0 0.0
    %1730 = vmatprep.subr.mxu0 0.0
    %1731 = vmatpush1.msra.mxu0 0.0
    %1732 = vmatprep.subr.mxu0 0.0
    %1733 = vmatpush1.msra.mxu0 0.0
    %1734 = vmatprep.subr.mxu0 0.0
    %1735 = vmatpush1.msra.mxu0 0.0
    %1736 = vmatprep.subr.mxu0 0.0
    %1737 = vmatpush1.msra.mxu0 0.0
    %1738 = vmatprep.subr.mxu0 0.0
    %1739 = vmatpush1.msra.mxu0 0.0
    %1740 = vmatprep.subr.mxu0 0.0
    %1741 = vmatpush1.msra.mxu0 0.0
    %1742 = vmatprep.subr.mxu0 0.0
    %1743 = vmatpush1.msra.mxu0 0.0
    %1744 = vmatprep.subr.mxu0 0.0
    %1745 = vmatpush1.msra.mxu0 0.0
    %1746 = vmatprep.subr.mxu0 0.0
    %1747 = vmatpush1.msra.mxu0 0.0
    %1748 = vmatprep.subr.mxu0 0.0
    %1749 = vmatpush1.msra.mxu0 0.0
    %1750 = vmatprep.mubr.f32.mxu0 0.0
    %1751 = vmatmul.mubr.f32.gmra.mrb[0].mxu0 %v1684
    %v1752 = vpop.f32.mrb[0].mxu0
    %v1753 = vadd.f32 0.0, %v1752
    %v1754 = vpop.f32.mrb[0].mxu0
    %1755 = vdwg.mxu0
    %v1756 = vadd.f32 %v1680, %v1753
    %v1757 = vxor.u32 %v1756, 2147483648
    %v1758 = vmul.f32 %v1757, 1.442695
    %v1759 = vpow.pop %v1758
    %v1760 = vadd.f32 %v1759, 1.0
    %v1761 = vrcp.pop %v1760
    %v1762 = vmul.f32 1.0, %v1761
    %v1763 = vtanh.pop %v1756
    %v1764 = vmul.f32 %v1762, %v1673
    %1766 = vrot.lane.b32.xlu0 %v1763, 64
    %v1767 = vpop.permute.xlu0 %1766
    %v1769 = vmul.f32 %v1762, %v1767
    %1771 = vrot.lane.b32.xlu0 %v1769, 32
    %v1772 = vpop.permute.xlu0 %1771
    %v1774 = vadd.f32 %v1764, %v1772
    %v1775 = vtanh.pop %v1774
    %1777 = vrot.lane.b32.xlu0 %v1775, 64
    %v1778 = vpop.permute.xlu0 %1777
    %v1780 = vmul.f32 %v1762, %v1778
    %v1781 = vld [vmem:[#allocation2 + $0xe] sm:$0x3]
    %1783 = vrot.lane.b32.xlu0 %v1780, 32
    %v1784 = vpop.permute.xlu0 %1783
    %v1785 = vsel %vm154, %v1784, 0
    %1787 = vmatprep.subr.mxu0 0.0
    %1788 = vmatpush1.msra.mxu0 %v1075
    %1789 = vmatprep.subr.mxu0 0.0
    %1790 = vmatpush1.msra.mxu0 %v1076
    %1791 = vmatprep.subr.mxu0 0.0
    %1792 = vmatpush1.msra.mxu0 %v1077
    %1793 = vmatprep.subr.mxu0 0.0
    %1794 = vmatpush1.msra.mxu0 %v1078
    %1795 = vmatprep.subr.mxu0 0.0
    %1796 = vmatpush1.msra.mxu0 0.0
    %1797 = vmatprep.subr.mxu0 0.0
    %1798 = vmatpush1.msra.mxu0 0.0
    %1799 = vmatprep.subr.mxu0 0.0
    %1800 = vmatpush1.msra.mxu0 0.0
    %1801 = vmatprep.subr.mxu0 0.0
    %1802 = vmatpush1.msra.mxu0 0.0
    %1803 = vmatprep.subr.mxu0 0.0
    %1804 = vmatpush1.msra.mxu0 0.0
    %1805 = vmatprep.subr.mxu0 0.0
    %1806 = vmatpush1.msra.mxu0 0.0
    %1807 = vmatprep.subr.mxu0 0.0
    %1808 = vmatpush1.msra.mxu0 0.0
    %1809 = vmatprep.subr.mxu0 0.0
    %1810 = vmatpush1.msra.mxu0 0.0
    %1811 = vmatprep.subr.mxu0 0.0
    %1812 = vmatpush1.msra.mxu0 0.0
    %1813 = vmatprep.subr.mxu0 0.0
    %1814 = vmatpush1.msra.mxu0 0.0
    %1815 = vmatprep.subr.mxu0 0.0
    %1816 = vmatpush1.msra.mxu0 0.0
    %1817 = vmatprep.subr.mxu0 0.0
    %1818 = vmatpush1.msra.mxu0 0.0
    %1819 = vmatprep.subr.mxu0 0.0
    %1820 = vmatpush1.msra.mxu0 0.0
    %1821 = vmatprep.subr.mxu0 0.0
    %1822 = vmatpush1.msra.mxu0 0.0
    %1823 = vmatprep.subr.mxu0 0.0
    %1824 = vmatpush1.msra.mxu0 0.0
    %1825 = vmatprep.subr.mxu0 0.0
    %1826 = vmatpush1.msra.mxu0 0.0
    %1827 = vmatprep.subr.mxu0 0.0
    %1828 = vmatpush1.msra.mxu0 0.0
    %1829 = vmatprep.subr.mxu0 0.0
    %1830 = vmatpush1.msra.mxu0 0.0
    %1831 = vmatprep.subr.mxu0 0.0
    %1832 = vmatpush1.msra.mxu0 0.0
    %1833 = vmatprep.subr.mxu0 0.0
    %1834 = vmatpush1.msra.mxu0 0.0
    %1835 = vmatprep.subr.mxu0 0.0
    %1836 = vmatpush1.msra.mxu0 0.0
    %1837 = vmatprep.subr.mxu0 0.0
    %1838 = vmatpush1.msra.mxu0 0.0
    %1839 = vmatprep.subr.mxu0 0.0
    %1840 = vmatpush1.msra.mxu0 0.0
    %1841 = vmatprep.subr.mxu0 0.0
    %1842 = vmatpush1.msra.mxu0 0.0
    %1843 = vmatprep.subr.mxu0 0.0
    %1844 = vmatpush1.msra.mxu0 0.0
    %1845 = vmatprep.subr.mxu0 0.0
    %1846 = vmatpush1.msra.mxu0 0.0
    %1847 = vmatprep.subr.mxu0 0.0
    %1848 = vmatpush1.msra.mxu0 0.0
    %1849 = vmatprep.subr.mxu0 0.0
    %1850 = vmatpush1.msra.mxu0 0.0
    %1851 = vmatprep.mubr.f32.mxu0 0.0
    %1852 = vmatmul.mubr.f32.gmra.mrb[0].mxu0 %v1785
    %v1853 = vpop.f32.mrb[0].mxu0
    %v1854 = vadd.f32 0.0, %v1853
    %v1855 = vpop.f32.mrb[0].mxu0
    %1856 = vdwg.mxu0
    %v1857 = vadd.f32 %v1781, %v1854
    %v1858 = vxor.u32 %v1857, 2147483648
    %v1859 = vmul.f32 %v1858, 1.442695
    %v1860 = vpow.pop %v1859
    %v1861 = vadd.f32 %v1860, 1.0
    %v1862 = vrcp.pop %v1861
    %v1863 = vmul.f32 1.0, %v1862
    %v1864 = vtanh.pop %v1857
    %v1865 = vmul.f32 %v1863, %v1774
    %1867 = vrot.lane.b32.xlu0 %v1864, 64
    %v1868 = vpop.permute.xlu0 %1867
    %v1870 = vmul.f32 %v1863, %v1868
    %1872 = vrot.lane.b32.xlu0 %v1870, 32
    %v1873 = vpop.permute.xlu0 %1872
    %v1875 = vadd.f32 %v1865, %v1873
    %v1876 = vtanh.pop %v1875
    %1878 = vrot.lane.b32.xlu0 %v1876, 64
    %v1879 = vpop.permute.xlu0 %1878
    %v1881 = vmul.f32 %v1863, %v1879
    %v1882 = vld [vmem:[%s5] sm:$0xff]
    %v1883 = vld [vmem:[%s5 + $0x8] sm:$0xff]
    %v1884 = vld [vmem:[%s5 + $0x10] sm:$0xff]
    %v1885 = vld [vmem:[%s5 + $0x18] sm:$0xff]
    %v1886 = vld [vmem:[%s6] sm:$0x1]
    %v1888 = vlaneseq
    %v1889 = vshrl.u32 %v1888, 7
    %v1890 = vsub.s32 0, %v1889
    %v1891 = vrot.slane %v1886, %v1890
    %1894 = vrot.lane.b32.xlu0 %v1881, 32
    %v1895 = vpop.permute.xlu0 %1894
    %v1896 = vsel %vm154, %v1895, 0
    %1898 = vmatprep.subr.mxu0 0.0
    %1899 = vmatpush1.msra.mxu0 %v1882
    %1900 = vmatprep.subr.mxu0 0.0
    %1901 = vmatpush1.msra.mxu0 %v1883
    %1902 = vmatprep.subr.mxu0 0.0
    %1903 = vmatpush1.msra.mxu0 %v1884
    %1904 = vmatprep.subr.mxu0 0.0
    %1905 = vmatpush1.msra.mxu0 %v1885
    %1906 = vmatprep.subr.mxu0 0.0
    %1907 = vmatpush1.msra.mxu0 0.0
    %1908 = vmatprep.subr.mxu0 0.0
    %1909 = vmatpush1.msra.mxu0 0.0
    %1910 = vmatprep.subr.mxu0 0.0
    %1911 = vmatpush1.msra.mxu0 0.0
    %1912 = vmatprep.subr.mxu0 0.0
    %1913 = vmatpush1.msra.mxu0 0.0
    %1914 = vmatprep.subr.mxu0 0.0
    %1915 = vmatpush1.msra.mxu0 0.0
    %1916 = vmatprep.subr.mxu0 0.0
    %1917 = vmatpush1.msra.mxu0 0.0
    %1918 = vmatprep.subr.mxu0 0.0
    %1919 = vmatpush1.msra.mxu0 0.0
    %1920 = vmatprep.subr.mxu0 0.0
    %1921 = vmatpush1.msra.mxu0 0.0
    %1922 = vmatprep.subr.mxu0 0.0
    %1923 = vmatpush1.msra.mxu0 0.0
    %1924 = vmatprep.subr.mxu0 0.0
    %1925 = vmatpush1.msra.mxu0 0.0
    %1926 = vmatprep.subr.mxu0 0.0
    %1927 = vmatpush1.msra.mxu0 0.0
    %1928 = vmatprep.subr.mxu0 0.0
    %1929 = vmatpush1.msra.mxu0 0.0
    %1930 = vmatprep.subr.mxu0 0.0
    %1931 = vmatpush1.msra.mxu0 0.0
    %1932 = vmatprep.subr.mxu0 0.0
    %1933 = vmatpush1.msra.mxu0 0.0
    %1934 = vmatprep.subr.mxu0 0.0
    %1935 = vmatpush1.msra.mxu0 0.0
    %1936 = vmatprep.subr.mxu0 0.0
    %1937 = vmatpush1.msra.mxu0 0.0
    %1938 = vmatprep.subr.mxu0 0.0
    %1939 = vmatpush1.msra.mxu0 0.0
    %1940 = vmatprep.subr.mxu0 0.0
    %1941 = vmatpush1.msra.mxu0 0.0
    %1942 = vmatprep.subr.mxu0 0.0
    %1943 = vmatpush1.msra.mxu0 0.0
    %1944 = vmatprep.subr.mxu0 0.0
    %1945 = vmatpush1.msra.mxu0 0.0
    %1946 = vmatprep.subr.mxu0 0.0
    %1947 = vmatpush1.msra.mxu0 0.0
    %1948 = vmatprep.subr.mxu0 0.0
    %1949 = vmatpush1.msra.mxu0 0.0
    %1950 = vmatprep.subr.mxu0 0.0
    %1951 = vmatpush1.msra.mxu0 0.0
    %1952 = vmatprep.subr.mxu0 0.0
    %1953 = vmatpush1.msra.mxu0 0.0
    %1954 = vmatprep.subr.mxu0 0.0
    %1955 = vmatpush1.msra.mxu0 0.0
    %1956 = vmatprep.subr.mxu0 0.0
    %1957 = vmatpush1.msra.mxu0 0.0
    %1958 = vmatprep.subr.mxu0 0.0
    %1959 = vmatpush1.msra.mxu0 0.0
    %1960 = vmatprep.subr.mxu0 0.0
    %1961 = vmatpush1.msra.mxu0 0.0
    %1962 = vmatprep.mubr.f32.mxu0 0.0
    %1963 = vmatmul.mubr.f32.gmra.mrb[0].mxu0 %v1896
    %v1964 = vpop.f32.mrb[0].mxu0
    %v1965 = vadd.f32 %v1891, %v1964
    %v1966 = vpop.f32.mrb[0].mxu0
    %1967 = vdwg.mxu0
    %vm1968 = vcmask 25600
    %1969 = vst.msk [vmem:[#allocation9] sm:$0x3] %vm1968, %v1965
    // Predicated region
    $region38: #{tpu_custom_call.1} parent=1 // pred_check
      _
    $region39: #{tpu_custom_call.1} parent=1 // pred_check_branch
      %1971 = sbr.rel (0) target = $region41
    $region40: #{tpu_custom_call.1} parent=1 // pred_region
      %s1973 = ssub.s32 32, 32
      %1974 = vsyncadd [#allocation6], %s1973
      %s1976 = sshll.u32 [#allocation9], 4
      %s1977 = int_to_ptr.vmem [resolvable:$true] %s1976
      %1979 = dma.vmem_to_hbm [thread:$0]  %s1977, 32, %s7, [#allocation6]
    $region41: #{tpu_custom_call.1} parent=1 // pred_fallthru
      _
    // Predicated region
    $region42: #{tpu_custom_call.1} parent=1 // pred_check
      _
    $region43: #{tpu_custom_call.1} parent=1 // pred_check_branch
      %1981 = sbr.rel (0) target = $region45
    $region44: #{tpu_custom_call.1} parent=1 // pred_region
      %1982 = dma.done [#allocation6], 32
    $region45: #{tpu_custom_call.1} parent=1 // pred_fallthru
      _
    %1983 = vsyncpa [#allocation5], 1
    %1984 = vsyncpa [#allocation8], 1
    %1985 = vsyncpa [#allocation6], 1

</llo_original>
